<compile_context>
chip_gen: v6e
topology: v6e:2x2x1
jax: 0.10.0
libtpu: 0.0.40
codegen_flags: <defaults>
</compile_context>

<pallas_src>
import jax
import jax.numpy as jnp
from jax import lax
from jax.experimental import pallas as pl
from jax.experimental.pallas import tpu as pltpu


def _rel_layer_kernel(d_u_ref, p_u_ref, adj_ref, wv_ref, v_src_ref, v_dst_ref,
                      out_ref, acc_ref, rsum_ref):
    k = pl.program_id(1)

    @pl.when(k == 0)
    def _init():
        acc_ref[...] = jnp.zeros_like(acc_ref)
        rsum_ref[...] = jnp.zeros_like(rsum_ref)

    d_u = d_u_ref[...]                       # [TM, D]  f32
    p_u = p_u_ref[...]                       # [TS, D]  f32
    adj = adj_ref[...].astype(jnp.float32)   # [TM, TS] 0/1 mask (stored bf16)

    # Folded per-node scores (e1/e2 pre-multiplied into Wk/Wq in the wrapper):
    #   s_dst[v] = d_u[v] . v_dst   (VPU mul + lane reduce)
    #   s_src[u] = v_src . p_u[u]   (tiny [1,D]x[D,TS] contraction)
    s_dst = jnp.sum(d_u * v_dst_ref[...], axis=-1, keepdims=True)          # [TM, 1]
    s_src = lax.dot_general(v_src_ref[...], p_u, (((1,), (1,)), ((), ())),
                            preferred_element_type=jnp.float32)            # [1, TS]

    # u_add_v on edges only (masked by adjacency).
    c = adj * (s_src + s_dst)                                              # [TM, TS]

    # Streaming EdgeWeightNorm(norm='right'): accumulate un-normalized message
    # sums and per-dst in-edge weight sums; normalize once in the finalize.
    rsum_ref[...] += jnp.sum(c, axis=-1, keepdims=True)

    # w_v projection of this src tile: p_u @ Wv^T  (contract on last dims).
    wv = lax.dot_general(p_u, wv_ref[...], (((1,), (1,)), ((), ())),
                         preferred_element_type=jnp.float32)               # [TS, D]
    # update_all(u_mul_e, sum):  acc += c @ wv
    acc_ref[...] += jnp.dot(c, wv, preferred_element_type=jnp.float32)     # [TM, D]

    @pl.when(k == pl.num_programs(1) - 1)
    def _finalize():
        rs = rsum_ref[...]
        # Guard isolated dst nodes / padded rows (all-zero adjacency rows).
        rs = jnp.where(jnp.abs(rs) < 1e-12, jnp.float32(1.0), rs)
        # NOTE: approx=True routes this to the EUP at scale; exact here so the
        # tight numerical check against the f32 reference holds.
        out_ref[...] = (acc_ref[...] * pl.reciprocal(rs, approx=False)
                        ).astype(out_ref.dtype)


def rel_layer(d_u, p_u, adj, params, *, tm=128, ts=256, out_dtype=jnp.float32):
    """Dense RelLayer forward.

    d_u: [Nd, D] dst (user) features, p_u: [Ns, D] src (item) features,
    adj: [Nd, Ns] 0/1 edge mask, params: dict of weights (nn.Linear layout).
    """
    n_dst, dim = d_u.shape
    n_src = p_u.shape[0]

    # Fold e1/e2 into Wk/Wq OUTSIDE the kernel (two tiny [1,D]x[D,D] matmuls):
    #   e1(Wk(p_u)) = p_u @ (e1 @ Wk)^T ,  e2(Wq(d_u)) = d_u @ (e2 @ Wq)^T
    v_src = params['e1'] @ params['w_k']     # [1, D]
    v_dst = params['e2'] @ params['w_q']     # [1, D]

    # Pad node counts up to tile multiples; padded rows have no edges so they
    # contribute nothing and padded dst rows are sliced off at the end.
    pd = (-n_dst) % tm
    ps = (-n_src) % ts
    d_u_p = jnp.pad(d_u, ((0, pd), (0, 0)))
    p_u_p = jnp.pad(p_u, ((0, ps), (0, 0)))
    adj_p = jnp.pad(adj, ((0, pd), (0, ps)))
    nd_p, ns_p = n_dst + pd, n_src + ps

    # Store the 0/1 adjacency in bf16: exact for a mask, halves HBM traffic of
    # the dominant operand.  (int8 / fp8 are further options at scale.)
    adj_p = adj_p.astype(jnp.bfloat16)

    grid = (nd_p // tm, ns_p // ts)

    out = pl.pallas_call(
        _rel_layer_kernel,
        out_shape=jax.ShapeDtypeStruct((nd_p, dim), out_dtype),
        grid_spec=pltpu.PrefetchScalarGridSpec(
            num_scalar_prefetch=0,
            grid=grid,
            in_specs=[
                pl.BlockSpec((tm, dim), lambda i, k: (i, 0)),    # d_u  (dst tile)
                pl.BlockSpec((ts, dim), lambda i, k: (k, 0)),    # p_u  (src tile)
                pl.BlockSpec((tm, ts), lambda i, k: (i, k)),     # adjacency tile
                pl.BlockSpec((dim, dim), lambda i, k: (0, 0)),   # W_v
                pl.BlockSpec((1, dim), lambda i, k: (0, 0)),     # v_src = e1 @ Wk
                pl.BlockSpec((1, dim), lambda i, k: (0, 0)),     # v_dst = e2 @ Wq
            ],
            out_specs=pl.BlockSpec((tm, dim), lambda i, k: (i, 0)),
            scratch_shapes=[
                pltpu.VMEM((tm, dim), jnp.float32),   # message accumulator
                pltpu.VMEM((tm, 1), jnp.float32),     # per-dst in-edge weight sum
            ],
        ),
        compiler_params=pltpu.CompilerParams(
            # dst tiles are independent -> "parallel" (2 TCs on v7x / megacore);
            # src is the streamed reduction axis -> "arbitrary", last in grid.
            dimension_semantics=("parallel", "arbitrary"),
            vmem_limit_bytes=48 * 1024 * 1024,   # fits v7x's 64 MiB VMEM too
        ),
    )(d_u_p, p_u_p, adj_p, params['w_v'], v_src, v_dst)

    return out[:n_dst]


def rel_layer_reference(d_u, p_u, adj, params):
    """Pure-JAX reference with the original (unfolded) module semantics."""
    wk = p_u @ params['w_k'].T
    wq = d_u @ params['w_q'].T
    wv = p_u @ params['w_v'].T
    s_src = (wk @ params['e1'].T).squeeze(-1)   # [Ns]
    s_dst = (wq @ params['e2'].T).squeeze(-1)   # [Nd]
    c = adj * (s_src[None, :] + s_dst[:, None])
    c = c / jnp.sum(c, axis=-1, keepdims=True)
    return c @ wv


if __name__ == "__main__":
    dim = 128     # hidden dim (lane-aligned)
    n_src = 512   # number of source nodes (items, p_u)
    n_dst = 256   # number of destination nodes (users, d_u)

    key = jax.random.PRNGKey(0)
    k_du, k_pu, k_wq, k_wk, k_wv, k_e1, k_e2 = jax.random.split(key, 7)

    d_u = jax.random.normal(k_du, (n_dst, dim), dtype=jnp.float32)
    p_u = jax.random.normal(k_pu, (n_src, dim), dtype=jnp.float32)

    # Deterministic bipartite adjacency: every dst node has >= 1 in-edge.
    u_idx = jnp.arange(n_src)[None, :]
    v_idx = jnp.arange(n_dst)[:, None]
    adj = ((u_idx + 2 * v_idx) % 3 == 0).astype(jnp.float32)   # [Nd, Ns]

    # nn.Linear(dim, dim, bias=False) -> weight [dim, dim]; Linear(dim,1) -> [1, dim]
    scale = 1.0 / jnp.sqrt(jnp.float32(dim))
    params = {
        'w_q': jax.random.uniform(k_wq, (dim, dim), jnp.float32, -scale, scale),
        'w_k': jax.random.uniform(k_wk, (dim, dim), jnp.float32, -scale, scale),
        'w_v': jax.random.uniform(k_wv, (dim, dim), jnp.float32, -scale, scale),
        'e1': jax.random.uniform(k_e1, (1, dim), jnp.float32, -scale, scale),
        'e2': jax.random.uniform(k_e2, (1, dim), jnp.float32, -scale, scale),
    }

    out = rel_layer(d_u, p_u, adj, params)
    out = jax.block_until_ready(out)

    ref = rel_layer_reference(d_u, p_u, adj, params)
    assert out.shape == (n_dst, dim)
    max_err = float(jnp.max(jnp.abs(out - ref)))
    assert jnp.allclose(out, ref, atol=1e-3, rtol=1e-3), f"mismatch vs reference: {max_err}"

    print("KERNEL_OK")
</pallas_src>

<mosaic_0001>
module attributes {stable_mosaic.version = 11 : i64} {
  func.func @_rel_layer_kernel(%arg0: i32, %arg1: i32, %arg2: memref<128x128xf32, #tpu.memory_space<vmem>>, %arg3: memref<256x128xf32, #tpu.memory_space<vmem>>, %arg4: memref<128x256xbf16, #tpu.memory_space<vmem>>, %arg5: memref<128x128xf32, #tpu.memory_space<vmem>>, %arg6: memref<1x128xf32, #tpu.memory_space<vmem>>, %arg7: memref<1x128xf32, #tpu.memory_space<vmem>>, %arg8: memref<128x128xf32, #tpu.memory_space<vmem>>, %arg9: memref<128x128xf32, #tpu.memory_space<vmem>>, %arg10: memref<128x1xf32, #tpu.memory_space<vmem>>) attributes {dimension_semantics = [#tpu.dimension_semantics<parallel>, #tpu.dimension_semantics<arbitrary>], iteration_bounds = array<i64: 2, 2>, scalar_prefetch = 0 : i64, scratch_operands = 2 : i64, tpu.core_type = #tpu.core_type<tc>, window_params = [{transform_indices = @transform_0, window_bounds = array<i64: 128, 128>}, {transform_indices = @transform_1, window_bounds = array<i64: 256, 128>}, {transform_indices = @transform_2, window_bounds = array<i64: 128, 256>}, {pipeline_mode = #tpu.pipeline_mode<synchronous>, transform_indices = @transform_3, window_bounds = array<i64: 128, 128>}, {pipeline_mode = #tpu.pipeline_mode<synchronous>, transform_indices = @transform_4, window_bounds = array<i64: 1, 128>}, {pipeline_mode = #tpu.pipeline_mode<synchronous>, transform_indices = @transform_5, window_bounds = array<i64: 1, 128>}, {transform_indices = @transform_6, window_bounds = array<i64: 128, 128>}]} {
    %c0_i32 = arith.constant 0 : i32
    %0 = arith.cmpi eq, %arg1, %c0_i32 : i32
    %1 = arith.extui %0 : i1 to i32
    %c0_i32_0 = arith.constant 0 : i32
    %2 = arith.cmpi ne, %1, %c0_i32_0 : i32
    scf.if %2 {
      %cst_25 = arith.constant 0.000000e+00 : f32
      %32 = vector.broadcast %cst_25 : f32 to vector<128x128xf32>
      %c0_26 = arith.constant 0 : index
      %c0_27 = arith.constant 0 : index
      %33 = vector.load %arg9[%c0_26, %c0_27] : memref<128x128xf32, #tpu.memory_space<vmem>>, vector<128x128xf32>
      tpu.vector_store %arg9[%c0_26, %c0_27], %32 {strides = array<i32>} : memref<128x128xf32, #tpu.memory_space<vmem>>, vector<128x128xf32>,
      %cst_28 = arith.constant 0.000000e+00 : f32
      %34 = vector.broadcast %cst_28 : f32 to vector<128x1xf32>
      %c0_29 = arith.constant 0 : index
      %c0_30 = arith.constant 0 : index
      %35 = vector.load %arg10[%c0_29, %c0_30] : memref<128x1xf32, #tpu.memory_space<vmem>>, vector<128x1xf32>
      tpu.vector_store %arg10[%c0_29, %c0_30], %34 {strides = array<i32>} : memref<128x1xf32, #tpu.memory_space<vmem>>, vector<128x1xf32>,
    } else {
    }
    %c0 = arith.constant 0 : index
    %c0_1 = arith.constant 0 : index
    %3 = vector.load %arg2[%c0, %c0_1] : memref<128x128xf32, #tpu.memory_space<vmem>>, vector<128x128xf32>
    %c0_2 = arith.constant 0 : index
    %c0_3 = arith.constant 0 : index
    %4 = vector.load %arg3[%c0_2, %c0_3] : memref<256x128xf32, #tpu.memory_space<vmem>>, vector<256x128xf32>
    %c0_4 = arith.constant 0 : index
    %c0_5 = arith.constant 0 : index
    %5 = vector.load %arg4[%c0_4, %c0_5] : memref<128x256xbf16, #tpu.memory_space<vmem>>, vector<128x256xbf16>
    %6 = arith.extf %5 : vector<128x256xbf16> to vector<128x256xf32>
    %c0_6 = arith.constant 0 : index
    %c0_7 = arith.constant 0 : index
    %7 = vector.load %arg7[%c0_6, %c0_7] : memref<1x128xf32, #tpu.memory_space<vmem>>, vector<1x128xf32>
    %8 = vector.broadcast %7 : vector<1x128xf32> to vector<128x128xf32>
    %9 = arith.mulf %3, %8 : vector<128x128xf32>
    %cst = arith.constant dense<0.000000e+00> : vector<128xf32>
    %10 = vector.multi_reduction <add>, %9, %cst [1] : vector<128x128xf32> to vector<128xf32>
    %11 = vector.shape_cast %10 : vector<128xf32> to vector<128x1xf32>
    %c0_8 = arith.constant 0 : index
    %c0_9 = arith.constant 0 : index
    %12 = vector.load %arg6[%c0_8, %c0_9] : memref<1x128xf32, #tpu.memory_space<vmem>>, vector<1x128xf32>
    %cst_10 = arith.constant dense<0.000000e+00> : vector<1x256xf32>
    %13 = tpu.matmul %12, %4, %cst_10 {dimension_numbers = #tpu.dot_dimension_numbers<[1], [1], [0], [0], [0, 0, 1, 0], [], []>} : vector<1x128xf32>, vector<256x128xf32>, vector<1x256xf32> -> vector<1x256xf32>
    %14 = vector.broadcast %13 : vector<1x256xf32> to vector<128x256xf32>
    %15 = vector.broadcast %11 : vector<128x1xf32> to vector<128x256xf32>
    %16 = arith.addf %14, %15 : vector<128x256xf32>
    %17 = arith.mulf %6, %16 : vector<128x256xf32>
    %c0_11 = arith.constant 0 : index
    %c0_12 = arith.constant 0 : index
    %18 = vector.load %arg10[%c0_11, %c0_12] : memref<128x1xf32, #tpu.memory_space<vmem>>, vector<128x1xf32>
    %cst_13 = arith.constant dense<0.000000e+00> : vector<128xf32>
    %19 = vector.multi_reduction <add>, %17, %cst_13 [1] : vector<128x256xf32> to vector<128xf32>
    %20 = vector.shape_cast %19 : vector<128xf32> to vector<128x1xf32>
    %21 = arith.addf %18, %20 : vector<128x1xf32>
    %c0_14 = arith.constant 0 : index
    %c0_15 = arith.constant 0 : index
    %22 = vector.load %arg10[%c0_14, %c0_15] : memref<128x1xf32, #tpu.memory_space<vmem>>, vector<128x1xf32>
    tpu.vector_store %arg10[%c0_14, %c0_15], %21 {strides = array<i32>} : memref<128x1xf32, #tpu.memory_space<vmem>>, vector<128x1xf32>,
    %c0_16 = arith.constant 0 : index
    %c0_17 = arith.constant 0 : index
    %23 = vector.load %arg5[%c0_16, %c0_17] : memref<128x128xf32, #tpu.memory_space<vmem>>, vector<128x128xf32>
    %cst_18 = arith.constant dense<0.000000e+00> : vector<256x128xf32>
    %24 = tpu.matmul %4, %23, %cst_18 {dimension_numbers = #tpu.dot_dimension_numbers<[1], [1], [0], [0], [0, 0, 1, 0], [], []>} : vector<256x128xf32>, vector<128x128xf32>, vector<256x128xf32> -> vector<256x128xf32>
    %c0_19 = arith.constant 0 : index
    %c0_20 = arith.constant 0 : index
    %25 = vector.load %arg9[%c0_19, %c0_20] : memref<128x128xf32, #tpu.memory_space<vmem>>, vector<128x128xf32>
    %cst_21 = arith.constant dense<0.000000e+00> : vector<128x128xf32>
    %26 = tpu.matmul %17, %24, %cst_21 {dimension_numbers = #tpu.dot_dimension_numbers<[1], [0], [0], [1], [0, 0, 1, 1], [], []>} : vector<128x256xf32>, vector<256x128xf32>, vector<128x128xf32> -> vector<128x128xf32>
    %27 = arith.addf %25, %26 : vector<128x128xf32>
    %c0_22 = arith.constant 0 : index
    %c0_23 = arith.constant 0 : index
    %28 = vector.load %arg9[%c0_22, %c0_23] : memref<128x128xf32, #tpu.memory_space<vmem>>, vector<128x128xf32>
    tpu.vector_store %arg9[%c0_22, %c0_23], %27 {strides = array<i32>} : memref<128x128xf32, #tpu.memory_space<vmem>>, vector<128x128xf32>,
    %c1_i32 = arith.constant 1 : i32
    %29 = arith.cmpi eq, %arg1, %c1_i32 : i32
    %30 = arith.extui %29 : i1 to i32
    %c0_i32_24 = arith.constant 0 : i32
    %31 = arith.cmpi ne, %30, %c0_i32_24 : i32
    scf.if %31 {
      %c0_25 = arith.constant 0 : index
      %c0_26 = arith.constant 0 : index
      %32 = vector.load %arg10[%c0_25, %c0_26] : memref<128x1xf32, #tpu.memory_space<vmem>>, vector<128x1xf32>
      %33 = math.absf %32 : vector<128x1xf32>
      %cst_27 = arith.constant 9.99999996E-13 : f32
      %34 = vector.broadcast %cst_27 : f32 to vector<128x1xf32>
      %35 = arith.cmpf olt, %33, %34 : vector<128x1xf32>
      %cst_28 = arith.constant 1.000000e+00 : f32
      %36 = vector.broadcast %cst_28 : f32 to vector<128x1xf32>
      %37 = arith.select %35, %36, %32 : vector<128x1xi1>, vector<128x1xf32>
      %c0_29 = arith.constant 0 : index
      %c0_30 = arith.constant 0 : index
      %38 = vector.load %arg9[%c0_29, %c0_30] : memref<128x128xf32, #tpu.memory_space<vmem>>, vector<128x128xf32>
      %39 = tpu.reciprocal %37 : vector<128x1xf32> -> vector<128x1xf32>
      %40 = vector.broadcast %39 : vector<128x1xf32> to vector<128x128xf32>
      %41 = arith.mulf %38, %40 : vector<128x128xf32>
      %c0_31 = arith.constant 0 : index
      %c0_32 = arith.constant 0 : index
      %42 = vector.load %arg8[%c0_31, %c0_32] : memref<128x128xf32, #tpu.memory_space<vmem>>, vector<128x128xf32>
      tpu.vector_store %arg8[%c0_31, %c0_32], %41 {strides = array<i32>} : memref<128x128xf32, #tpu.memory_space<vmem>>, vector<128x128xf32>,
    } else {
    }
    return
  }
  func.func @transform_0(%arg0: i32, %arg1: i32) -> (i32, i32) {
    %c0_i32 = arith.constant 0 : i32
    %c0_i32_0 = arith.constant 0 : i32
    return %arg0, %c0_i32 : i32, i32
  }
  func.func @transform_1(%arg0: i32, %arg1: i32) -> (i32, i32) {
    %c0_i32 = arith.constant 0 : i32
    %c0_i32_0 = arith.constant 0 : i32
    return %arg1, %c0_i32 : i32, i32
  }
  func.func @transform_2(%arg0: i32, %arg1: i32) -> (i32, i32) {
    %c0_i32 = arith.constant 0 : i32
    return %arg0, %arg1 : i32, i32
  }
  func.func @transform_3(%arg0: i32, %arg1: i32) -> (i32, i32) {
    %c0_i32 = arith.constant 0 : i32
    %c0_i32_0 = arith.constant 0 : i32
    %c0_i32_1 = arith.constant 0 : i32
    return %c0_i32, %c0_i32_0 : i32, i32
  }
  func.func @transform_4(%arg0: i32, %arg1: i32) -> (i32, i32) {
    %c0_i32 = arith.constant 0 : i32
    %c0_i32_0 = arith.constant 0 : i32
    %c0_i32_1 = arith.constant 0 : i32
    return %c0_i32, %c0_i32_0 : i32, i32
  }
  func.func @transform_5(%arg0: i32, %arg1: i32) -> (i32, i32) {
    %c0_i32 = arith.constant 0 : i32
    %c0_i32_0 = arith.constant 0 : i32
    %c0_i32_1 = arith.constant 0 : i32
    return %c0_i32, %c0_i32_0 : i32, i32
  }
  func.func @transform_6(%arg0: i32, %arg1: i32) -> (i32, i32) {
    %c0_i32 = arith.constant 0 : i32
    %c0_i32_0 = arith.constant 0 : i32
    return %arg0, %c0_i32 : i32, i32
  }
}

</mosaic_0001>

<llo_original>
// kernel: tpu_custom_call.1
$region0: #{tpu_custom_call.1}
  #allocation0 [shape = 'u32[]', space=smem, size = 0x4, offset = 0x4, fixed_abs, tag = 'smem constant byte address 0x4 - core index']
  #allocation1 [shape = 'u32[144,128]{1,0:T(1,128)}', space=vmem, size = 0x12000, scoped, tag = 'internal scratch']
  #allocation2 [shape = 'f32[128,128]{1,0:T(8,128)}', space=vmem, size = 0x10000, scoped, tag = 'scratch operand']
  #allocation3 [shape = 'f32[128,1]{1,0:T(8,128)}', space=vmem, size = 0x10000, scoped, tag = 'scratch operand']
  %s0 = inlined_call_operand.hbm [shape: f32[256,128], index: 0, kind: input, shape index: {}]
  %s1 = inlined_call_operand.hbm [shape: f32[512,128], index: 1, kind: input, shape index: {}]
  %s2 = inlined_call_operand.hbm [shape: bf16[256,512], index: 2, kind: input, shape index: {}]
  %s3 = inlined_call_operand.hbm [shape: f32[128,128], index: 3, kind: input, shape index: {}]
  %s4 = inlined_call_operand.vmem [shape: f32[1,128], index: 4, kind: input, shape index: {}]
  %s5 = inlined_call_operand.vmem [shape: f32[1,128], index: 5, kind: input, shape index: {}]
  %s6 = inlined_call_operand.hbm [shape: f32[256,128], index: 6, kind: output, shape index: {}]
  %s7 = sld [smem:[#allocation0]]
  $region81: #{tpu_custom_call.1} parent=0
    _
  %s9 = ssub.s32 1, %s7
  %s10 = scalar_select 0, %s9, %s7
  $region1: #{tpu_custom_call.1} parent=0
    #allocation4 [shape = 'u8[131072]{0}', space=vmem, size = 0x20000, scoped, tag = 'input window, operand 0']
    #allocation5 [shape = 's32[2]{0}', space=sflag, size = 0x8, scoped, tag = 'scoped memory for tpu_custom_call.1']
    #allocation6 [shape = 's32[2]{0}', space=sflag, size = 0x8, scoped, tag = 'scoped memory for tpu_custom_call.1']
    #allocation7 [shape = 'u8[262144]{0}', space=vmem, size = 0x40000, scoped, tag = 'input window, operand 1']
    #allocation8 [shape = 's32[2]{0}', space=sflag, size = 0x8, scoped, tag = 'scoped memory for tpu_custom_call.1']
    #allocation9 [shape = 'u8[131072]{0}', space=vmem, size = 0x20000, scoped, tag = 'input window, operand 2']
    #allocation10 [shape = 'u8[65536]{0}', space=vmem, size = 0x10000, scoped, tag = 'input window, operand 3, single buffered']
    #allocation11 [shape = 's32[1]{0}', space=sflag, size = 0x4, scoped, tag = 'scoped memory for tpu_custom_call.1']
    #allocation12 [shape = 'u8[131072]{0}', space=vmem, size = 0x20000, scoped, tag = 'output window, operand 0']
    %11 = vsyncpa [#allocation5], 0
    %s12 = scalar_lea.sflag [#allocation5], 1
    %13 = vsyncpa %s12, 0
    %14 = vsyncpa [#allocation8], 0
    %s15 = scalar_lea.sflag [#allocation8], 1
    %16 = vsyncpa %s15, 0
    %17 = vsyncpa [#allocation11], 0
    %18 = vsyncpa [#allocation6], 0
    %s19 = scalar_lea.sflag [#allocation6], 1
    %20 = vsyncpa %s19, 0
    loop: start=0, step=1, limit=6
    $region2: #{tpu_custom_call.1} parent=1 // loop_pre_header
      _
    $region3: #{tpu_custom_call.1} parent=1 // loop_header
      %s22 = sphi 0, %s26
      %p23 = scmp.ge.s32.totalorder %s22, 6
      %s29 = sphi 0, %s41
      %s30 = sphi 0, %s37
      %s31 = sphi 0, %s29
      %s32 = sphi 0, %s30
      %s33 = sphi 0, %s31
      %s34 = sphi 0, %s32
      %s44 = sphi 0, %s46
      %s47 = sphi 0, %s44
      %s48 = sphi 0, %s47
      %s64 = sphi 0, %s48
      %s70 = sphi 0, %s72
      %s73 = sphi 0, %s70
      %s74 = sphi 0, %s73
      %s90 = sphi 0, %s74
      %s98 = sphi 0, %s100
      %s101 = sphi 0, %s98
      %s102 = sphi 0, %s101
      %s118 = sphi 0, %s102
      %s122 = sphi 0, %s122
      %s124 = sphi 0, %s122
      %s125 = sphi 0, %s124
      %s139 = sphi 0, %s125
      %s143 = sphi 0, %s143
      %s145 = sphi 0, %s143
      %s146 = sphi 0, %s145
      %s160 = sphi 0, %s146
      %s164 = sphi 0, %s164
      %s166 = sphi 0, %s164
      %s167 = sphi 0, %s166
      %s181 = sphi 0, %s167
      %s187 = sphi 0, %s189
      %s190 = sphi 0, %s187
      %s191 = sphi 0, %s190
      %s207 = sphi 0, %s191
    $region4: #{tpu_custom_call.1} parent=1 // loop_header_branch
      %25 = sbr.rel (%p23) target = $region8
    $region5: #{tpu_custom_call.1} parent=1 // loop_body
      %s27 = ssub.s32 %s22, 1
      %s28 = ssub.s32 %s22, 2
      %s35 = sadd.s32 1, %s30
      %p36 = scmp.ge.s32.totalorder %s35, 2
      %s37 = scalar_select %p36, 0, %s35
      %s38 = sadd.s32 1, %s29
      %s39 = scalar_select %p36, %s38, %s29
      %p40 = scmp.ge.s32.totalorder %s39, 2
      %s41 = scalar_select %p40, 0, %s39
      %s42 = ssub.s32 %s29, %s41
      %p43 = scmp.eq.s32.totalorder %s42, 0
      %s45 = sadd.s32 %s44, 1
      %s46 = scalar_select %p43, %s44, %s45
      %p49 = pneg %p43
      %p50 = scmp.eq.s32.totalorder %s22, 3
      %p51 = por %p49, %p50
      %p52 = scmp.ne.s32.totalorder %s44, %s47
      %p53 = scmp.eq.s32.totalorder %s22, 0
      %p54 = por %p52, %p53
      %p55 = scmp.ne.s32.totalorder %s44, %s47
      %p56 = scmp.eq.s32.totalorder %s27, 3
      %p57 = por %p55, %p56
      %p58 = scmp.ne.s32.totalorder %s47, %s48
      %p59 = scmp.eq.s32.totalorder %s27, 0
      %p60 = por %p58, %p59
      %p61 = scmp.ne.s32.totalorder %s47, %s48
      %p62 = scmp.eq.s32.totalorder %s28, 3
      %p63 = por %p61, %p62
      %p65 = scmp.ne.s32.totalorder %s48, %s64
      %p66 = scmp.eq.s32.totalorder %s28, 0
      %p67 = por %p65, %p66
      %s68 = ssub.s32 %s30, %s37
      %p69 = scmp.eq.s32.totalorder %s68, 0
      %s71 = sadd.s32 %s70, 1
      %s72 = scalar_select %p69, %s70, %s71
      %p75 = pneg %p69
      %p76 = scmp.eq.s32.totalorder %s22, 3
      %p77 = por %p75, %p76
      %p78 = scmp.ne.s32.totalorder %s70, %s73
      %p79 = scmp.eq.s32.totalorder %s22, 0
      %p80 = por %p78, %p79
      %p81 = scmp.ne.s32.totalorder %s70, %s73
      %p82 = scmp.eq.s32.totalorder %s27, 3
      %p83 = por %p81, %p82
      %p84 = scmp.ne.s32.totalorder %s73, %s74
      %p85 = scmp.eq.s32.totalorder %s27, 0
      %p86 = por %p84, %p85
      %p87 = scmp.ne.s32.totalorder %s73, %s74
      %p88 = scmp.eq.s32.totalorder %s28, 3
      %p89 = por %p87, %p88
      %p91 = scmp.ne.s32.totalorder %s74, %s90
      %p92 = scmp.eq.s32.totalorder %s28, 0
      %p93 = por %p91, %p92
      %s94 = ssub.s32 %s29, %s41
      %s95 = ssub.s32 %s30, %s37
      %s96 = sor.u32 %s94, %s95
      %p97 = scmp.eq.s32.totalorder %s96, 0
      %s99 = sadd.s32 %s98, 1
      %s100 = scalar_select %p97, %s98, %s99
      %p103 = pneg %p97
      %p104 = scmp.eq.s32.totalorder %s22, 3
      %p105 = por %p103, %p104
      %p106 = scmp.ne.s32.totalorder %s98, %s101
      %p107 = scmp.eq.s32.totalorder %s22, 0
      %p108 = por %p106, %p107
      %p109 = scmp.ne.s32.totalorder %s98, %s101
      %p110 = scmp.eq.s32.totalorder %s27, 3
      %p111 = por %p109, %p110
      %p112 = scmp.ne.s32.totalorder %s101, %s102
      %p113 = scmp.eq.s32.totalorder %s27, 0
      %p114 = por %p112, %p113
      %p115 = scmp.ne.s32.totalorder %s101, %s102
      %p116 = scmp.eq.s32.totalorder %s28, 3
      %p117 = por %p115, %p116
      %p119 = scmp.ne.s32.totalorder %s102, %s118
      %p120 = scmp.eq.s32.totalorder %s28, 0
      %p121 = por %p119, %p120
      %s123 = sadd.s32 %s122, 1
      %p126 = scmp.eq.s32.totalorder %s22, 3
      %p127 = scmp.ne.s32.totalorder %s122, %s124
      %p128 = scmp.eq.s32.totalorder %s22, 0
      %p129 = por %p127, %p128
      %p130 = scmp.ne.s32.totalorder %s122, %s124
      %p131 = scmp.eq.s32.totalorder %s27, 3
      %p132 = por %p130, %p131
      %p133 = scmp.ne.s32.totalorder %s124, %s125
      %p134 = scmp.eq.s32.totalorder %s27, 0
      %p135 = por %p133, %p134
      %p136 = scmp.ne.s32.totalorder %s124, %s125
      %p137 = scmp.eq.s32.totalorder %s28, 3
      %p138 = por %p136, %p137
      %p140 = scmp.ne.s32.totalorder %s125, %s139
      %p141 = scmp.eq.s32.totalorder %s28, 0
      %p142 = por %p140, %p141
      %s144 = sadd.s32 %s143, 1
      %p147 = scmp.eq.s32.totalorder %s22, 3
      %p148 = scmp.ne.s32.totalorder %s143, %s145
      %p149 = scmp.eq.s32.totalorder %s22, 0
      %p150 = por %p148, %p149
      %p151 = scmp.ne.s32.totalorder %s143, %s145
      %p152 = scmp.eq.s32.totalorder %s27, 3
      %p153 = por %p151, %p152
      %p154 = scmp.ne.s32.totalorder %s145, %s146
      %p155 = scmp.eq.s32.totalorder %s27, 0
      %p156 = por %p154, %p155
      %p157 = scmp.ne.s32.totalorder %s145, %s146
      %p158 = scmp.eq.s32.totalorder %s28, 3
      %p159 = por %p157, %p158
      %p161 = scmp.ne.s32.totalorder %s146, %s160
      %p162 = scmp.eq.s32.totalorder %s28, 0
      %p163 = por %p161, %p162
      %s165 = sadd.s32 %s164, 1
      %p168 = scmp.eq.s32.totalorder %s22, 3
      %p169 = scmp.ne.s32.totalorder %s164, %s166
      %p170 = scmp.eq.s32.totalorder %s22, 0
      %p171 = por %p169, %p170
      %p172 = scmp.ne.s32.totalorder %s164, %s166
      %p173 = scmp.eq.s32.totalorder %s27, 3
      %p174 = por %p172, %p173
      %p175 = scmp.ne.s32.totalorder %s166, %s167
      %p176 = scmp.eq.s32.totalorder %s27, 0
      %p177 = por %p175, %p176
      %p178 = scmp.ne.s32.totalorder %s166, %s167
      %p179 = scmp.eq.s32.totalorder %s28, 3
      %p180 = por %p178, %p179
      %p182 = scmp.ne.s32.totalorder %s167, %s181
      %p183 = scmp.eq.s32.totalorder %s28, 0
      %p184 = por %p182, %p183
      %s185 = ssub.s32 %s29, %s41
      %p186 = scmp.eq.s32.totalorder %s185, 0
      %s188 = sadd.s32 %s187, 1
      %s189 = scalar_select %p186, %s187, %s188
      %p192 = pneg %p186
      %p193 = scmp.eq.s32.totalorder %s22, 3
      %p194 = por %p192, %p193
      %p195 = scmp.ne.s32.totalorder %s187, %s190
      %p196 = scmp.eq.s32.totalorder %s22, 0
      %p197 = por %p195, %p196
      %p198 = scmp.ne.s32.totalorder %s187, %s190
      %p199 = scmp.eq.s32.totalorder %s27, 3
      %p200 = por %p198, %p199
      %p201 = scmp.ne.s32.totalorder %s190, %s191
      %p202 = scmp.eq.s32.totalorder %s27, 0
      %p203 = por %p201, %p202
      %p204 = scmp.ne.s32.totalorder %s190, %s191
      %p205 = scmp.eq.s32.totalorder %s28, 3
      %p206 = por %p204, %p205
      %p208 = scmp.ne.s32.totalorder %s191, %s207
      %p209 = scmp.eq.s32.totalorder %s28, 0
      %p210 = por %p208, %p209
      %p211 = scmp.le.s32.totalorder 1, %s22
      %p212 = scmp.lt.s32.totalorder %s22, 5
      %p213 = pnand %p211, %p212
      %p214 = pneg %p213
      // Predicated region
      $region9: #{tpu_custom_call.1} parent=5 // pred_check
        _
      $region10: #{tpu_custom_call.1} parent=5 // pred_check_branch
        %216 = sbr.rel (%p213) target = $region12
      $region11: #{tpu_custom_call.1} parent=5 // pred_region
        %s217 = ssub.s32 %s22, 1
        // Predicated region
        $region13: #{tpu_custom_call.1} parent=11 // pred_check
          %p218 = pneg %p135
        $region14: #{tpu_custom_call.1} parent=11 // pred_check_branch
          %220 = sbr.rel (%p218) target = $region16
        $region15: #{tpu_custom_call.1} parent=11 // pred_region
          %s222 = ssub.s32 2048, 2048
          %223 = vsyncadd [#allocation11], %s222
          %s224 = sshll.u32 [#allocation10], 4
          %s225 = int_to_ptr.vmem [resolvable:$true] %s224
          %230 = dma.hbm_to_vmem [thread:$0]  %s3, 2048, %s225, [#allocation11], 128, 128, 8
        $region16: #{tpu_custom_call.1} parent=11 // pred_fallthru
          _
        // Predicated region
        $region17: #{tpu_custom_call.1} parent=11 // pred_check
          %p231 = pneg %p156
        $region18: #{tpu_custom_call.1} parent=11 // pred_check_branch
          %233 = sbr.rel (%p231) target = $region20
        $region19: #{tpu_custom_call.1} parent=11 // pred_region
          _
        $region20: #{tpu_custom_call.1} parent=11 // pred_fallthru
          _
        // Predicated region
        $region21: #{tpu_custom_call.1} parent=11 // pred_check
          %p234 = pneg %p177
        $region22: #{tpu_custom_call.1} parent=11 // pred_check_branch
          %236 = sbr.rel (%p234) target = $region24
        $region23: #{tpu_custom_call.1} parent=11 // pred_region
          _
        $region24: #{tpu_custom_call.1} parent=11 // pred_fallthru
          _
      $region12: #{tpu_custom_call.1} parent=5 // pred_fallthru
        _
      %p237 = scmp.lt.s32.totalorder %s22, 4
      // Predicated region
      $region25: #{tpu_custom_call.1} parent=5 // pred_check
        %p238 = pneg %p237
      $region26: #{tpu_custom_call.1} parent=5 // pred_check_branch
        %240 = sbr.rel (%p238) target = $region28
      $region27: #{tpu_custom_call.1} parent=5 // pred_region
        // Predicated region
        $region29: #{tpu_custom_call.1} parent=27 // pred_check
          %p241 = pneg %p54
        $region30: #{tpu_custom_call.1} parent=27 // pred_check_branch
          %243 = sbr.rel (%p241) target = $region32
        $region31: #{tpu_custom_call.1} parent=27 // pred_region
          %s244 = sand.u32 %s44, 1
          %s245 = scalar_lea.sflag [#allocation5], %s244
          %s246 = sand.u32 %s44, 1
          %s247 = smul.addr %s246, 128
          %s248 = scalar_lea.vmem [#allocation4], %s247
          %s249 = smul.u32 16, %s29
          %s251 = ssub.s32 2048, 2048
          %252 = vsyncadd %s245, %s251
          %s253 = smul.addr %s249, 128
          %s254 = scalar_lea.hbm %s0, %s253
          %s255 = sshll.u32 %s248, 4
          %s256 = int_to_ptr.vmem [resolvable:$true] %s255
          %261 = dma.hbm_to_vmem [thread:$0]  %s254, 2048, %s256, %s245, 128, 128, 8
        $region32: #{tpu_custom_call.1} parent=27 // pred_fallthru
          _
        // Predicated region
        $region33: #{tpu_custom_call.1} parent=27 // pred_check
          %p262 = pneg %p80
        $region34: #{tpu_custom_call.1} parent=27 // pred_check_branch
          %264 = sbr.rel (%p262) target = $region36
        $region35: #{tpu_custom_call.1} parent=27 // pred_region
          %s265 = sand.u32 %s22, 1
          %s266 = scalar_lea.sflag [#allocation8], %s265
          %s267 = sand.u32 %s70, 1
          %s268 = smul.addr %s267, 256
          %s269 = scalar_lea.vmem [#allocation7], %s268
          %s270 = smul.u32 32, %s30
          %s272 = ssub.s32 4096, 4096
          %273 = vsyncadd %s266, %s272
          %s274 = smul.addr %s270, 128
          %s275 = scalar_lea.hbm %s1, %s274
          %s276 = sshll.u32 %s269, 4
          %s277 = int_to_ptr.vmem [resolvable:$true] %s276
          %282 = dma.hbm_to_vmem [thread:$0]  %s275, 4096, %s277, %s266, 128, 128, 8
        $region36: #{tpu_custom_call.1} parent=27 // pred_fallthru
          _
        // Predicated region
        $region37: #{tpu_custom_call.1} parent=27 // pred_check
          %p283 = pneg %p108
        $region38: #{tpu_custom_call.1} parent=27 // pred_check_branch
          %285 = sbr.rel (%p283) target = $region40
        $region39: #{tpu_custom_call.1} parent=27 // pred_region
          %s286 = sand.u32 %s22, 1
          %s287 = scalar_lea.sflag [#allocation8], %s286
          %s288 = sand.u32 %s98, 1
          %s289 = smul.addr %s288, 128
          %s290 = scalar_lea.vmem [#allocation9], %s289
          %s291 = smul.u32 16, %s29
          %s292 = smul.u32 2, %s30
          %s294 = ssub.s32 2048, 2048
          %295 = vsyncadd %s287, %s294
          %s296 = smul.addr %s291, 4
          %s297 = sadd.s32 %s292, %s296
          %s298 = smul.addr %s297, 64
          %s299 = scalar_lea.hbm %s2, %s298
          %s300 = sshll.u32 %s290, 4
          %s301 = int_to_ptr.vmem [resolvable:$true] %s300
          %306 = dma.hbm_to_vmem [thread:$0]  %s299, 2048, %s301, %s287, 256, 128, 8
        $region40: #{tpu_custom_call.1} parent=27 // pred_fallthru
          _
      $region28: #{tpu_custom_call.1} parent=5 // pred_fallthru
        _
      %p307 = scmp.le.s32.totalorder 1, %s22
      %p308 = scmp.lt.s32.totalorder %s22, 5
      %p309 = pnand %p307, %p308
      %p310 = pneg %p309
      // Predicated region
      $region41: #{tpu_custom_call.1} parent=5 // pred_check
        _
      $region42: #{tpu_custom_call.1} parent=5 // pred_check_branch
        %312 = sbr.rel (%p309) target = $region44
      $region43: #{tpu_custom_call.1} parent=5 // pred_region
        %s313 = ssub.s32 %s22, 1
        %s314 = sand.u32 %s47, 1
        %s315 = scalar_lea.sflag [#allocation5], %s314
        %s316 = sand.u32 %s47, 1
        %s317 = smul.addr %s316, 128
        %s318 = scalar_lea.vmem [#allocation4], %s317
        // Predicated region
        $region45: #{tpu_custom_call.1} parent=43 // pred_check
          %p319 = pneg %p60
        $region46: #{tpu_custom_call.1} parent=43 // pred_check_branch
          %321 = sbr.rel (%p319) target = $region48
        $region47: #{tpu_custom_call.1} parent=43 // pred_region
          %322 = dma.done %s315, 2048
        $region48: #{tpu_custom_call.1} parent=43 // pred_fallthru
          _
        %s323 = sand.u32 %s27, 1
        %s324 = scalar_lea.sflag [#allocation8], %s323
        %s325 = sand.u32 %s73, 1
        %s326 = smul.addr %s325, 256
        %s327 = scalar_lea.vmem [#allocation7], %s326
        // Predicated region
        $region49: #{tpu_custom_call.1} parent=43 // pred_check
          %p328 = pneg %p86
        $region50: #{tpu_custom_call.1} parent=43 // pred_check_branch
          %330 = sbr.rel (%p328) target = $region52
        $region51: #{tpu_custom_call.1} parent=43 // pred_region
          %331 = dma.done %s324, 4096
        $region52: #{tpu_custom_call.1} parent=43 // pred_fallthru
          _
        %s332 = sand.u32 %s27, 1
        %s333 = scalar_lea.sflag [#allocation8], %s332
        %s334 = sand.u32 %s101, 1
        %s335 = smul.addr %s334, 128
        %s336 = scalar_lea.vmem [#allocation9], %s335
        // Predicated region
        $region53: #{tpu_custom_call.1} parent=43 // pred_check
          %p337 = pneg %p114
        $region54: #{tpu_custom_call.1} parent=43 // pred_check_branch
          %339 = sbr.rel (%p337) target = $region56
        $region55: #{tpu_custom_call.1} parent=43 // pred_region
          %340 = dma.done %s333, 2048
        $region56: #{tpu_custom_call.1} parent=43 // pred_fallthru
          _
        // Predicated region
        $region57: #{tpu_custom_call.1} parent=43 // pred_check
          %p341 = pneg %p135
        $region58: #{tpu_custom_call.1} parent=43 // pred_check_branch
          %343 = sbr.rel (%p341) target = $region60
        $region59: #{tpu_custom_call.1} parent=43 // pred_region
          %344 = dma.done [#allocation11], 2048
        $region60: #{tpu_custom_call.1} parent=43 // pred_fallthru
          _
        %s345 = sand.u32 %s47, 1
        %s346 = scalar_lea.sflag [#allocation5], %s345
        %s347 = sand.u32 %s47, 1
        %s348 = smul.addr %s347, 128
        %s349 = scalar_lea.vmem [#allocation4], %s348
        %p350 = pneg %p60
        %p351 = pneg %p57
        %s352 = sand.u32 %s27, 1
        %s353 = scalar_lea.sflag [#allocation8], %s352
        %s354 = sand.u32 %s73, 1
        %s355 = smul.addr %s354, 256
        %s356 = scalar_lea.vmem [#allocation7], %s355
        %p357 = pneg %p86
        %p358 = pneg %p83
        %s359 = sand.u32 %s27, 1
        %s360 = scalar_lea.sflag [#allocation8], %s359
        %s361 = sand.u32 %s101, 1
        %s362 = smul.addr %s361, 128
        %s363 = scalar_lea.vmem [#allocation9], %s362
        %p364 = pneg %p114
        %p365 = pneg %p111
        %p366 = pneg %p135
        %p367 = pneg %p132
        %p368 = pneg %p156
        %p369 = pneg %p153
        %p370 = pneg %p177
        %p371 = pneg %p174
        %p372 = pneg %p203
        %p373 = pneg %p200
        %s374 = sand.u32 %s190, 1
        %s375 = scalar_lea.sflag [#allocation6], %s374
        %s376 = sand.u32 %s190, 1
        %s377 = smul.addr %s376, 128
        %s378 = scalar_lea.vmem [#allocation12], %s377
        %s379 = smul.u32 16, %s31
        %s380 = smul.u32 32, %s32
        %s381 = smul.u32 16, %s31
        %s382 = smul.u32 2, %s32
        %s383 = smul.u32 16, %s31
        %p384 = scmp.eq.s32.totalorder %s32, 0
        // Predicated region
        $region61: #{tpu_custom_call.1} parent=43 // pred_check
          %p385 = pneg %p384
        $region62: #{tpu_custom_call.1} parent=43 // pred_check_branch
          %387 = sbr.rel (%p385) target = $region64
        $region63: #{tpu_custom_call.1} parent=43 // pred_region
          %388 = vst [vmem:[#allocation2] sm:$0xff] 0.0
          %389 = vst [vmem:[#allocation2 + $0x8] sm:$0xff] 0.0
          %390 = vst [vmem:[#allocation2 + $0x10] sm:$0xff] 0.0
          %391 = vst [vmem:[#allocation2 + $0x18] sm:$0xff] 0.0
          %392 = vst [vmem:[#allocation2 + $0x20] sm:$0xff] 0.0
          %393 = vst [vmem:[#allocation2 + $0x28] sm:$0xff] 0.0
          %394 = vst [vmem:[#allocation2 + $0x30] sm:$0xff] 0.0
          %395 = vst [vmem:[#allocation2 + $0x38] sm:$0xff] 0.0
          %396 = vst [vmem:[#allocation2 + $0x40] sm:$0xff] 0.0
          %397 = vst [vmem:[#allocation2 + $0x48] sm:$0xff] 0.0
          %398 = vst [vmem:[#allocation2 + $0x50] sm:$0xff] 0.0
          %399 = vst [vmem:[#allocation2 + $0x58] sm:$0xff] 0.0
          %400 = vst [vmem:[#allocation2 + $0x60] sm:$0xff] 0.0
          %401 = vst [vmem:[#allocation2 + $0x68] sm:$0xff] 0.0
          %402 = vst [vmem:[#allocation2 + $0x70] sm:$0xff] 0.0
          %403 = vst [vmem:[#allocation2 + $0x78] sm:$0xff] 0.0
          %vm404 = vcmask 7168
          %405 = vst.msk [vmem:[#allocation3] sm:$0xff] %vm404, 0.0
          %406 = vst.msk [vmem:[#allocation3 + $0x8] sm:$0xff] %vm404, 0.0
          %407 = vst.msk [vmem:[#allocation3 + $0x10] sm:$0xff] %vm404, 0.0
          %408 = vst.msk [vmem:[#allocation3 + $0x18] sm:$0xff] %vm404, 0.0
          %409 = vst.msk [vmem:[#allocation3 + $0x20] sm:$0xff] %vm404, 0.0
          %410 = vst.msk [vmem:[#allocation3 + $0x28] sm:$0xff] %vm404, 0.0
          %411 = vst.msk [vmem:[#allocation3 + $0x30] sm:$0xff] %vm404, 0.0
          %412 = vst.msk [vmem:[#allocation3 + $0x38] sm:$0xff] %vm404, 0.0
          %413 = vst.msk [vmem:[#allocation3 + $0x40] sm:$0xff] %vm404, 0.0
          %414 = vst.msk [vmem:[#allocation3 + $0x48] sm:$0xff] %vm404, 0.0
          %415 = vst.msk [vmem:[#allocation3 + $0x50] sm:$0xff] %vm404, 0.0
          %416 = vst.msk [vmem:[#allocation3 + $0x58] sm:$0xff] %vm404, 0.0
          %417 = vst.msk [vmem:[#allocation3 + $0x60] sm:$0xff] %vm404, 0.0
          %418 = vst.msk [vmem:[#allocation3 + $0x68] sm:$0xff] %vm404, 0.0
          %419 = vst.msk [vmem:[#allocation3 + $0x70] sm:$0xff] %vm404, 0.0
          %420 = vst.msk [vmem:[#allocation3 + $0x78] sm:$0xff] %vm404, 0.0
        $region64: #{tpu_custom_call.1} parent=43 // pred_fallthru
          _
        %v421 = vld [vmem:[%s318] sm:$0xff]
        %v422 = vld [vmem:[%s318 + $0x8] sm:$0xff]
        %v423 = vld [vmem:[%s318 + $0x10] sm:$0xff]
        %v424 = vld [vmem:[%s318 + $0x18] sm:$0xff]
        %v425 = vld [vmem:[%s318 + $0x20] sm:$0xff]
        %v426 = vld [vmem:[%s318 + $0x28] sm:$0xff]
        %v427 = vld [vmem:[%s318 + $0x30] sm:$0xff]
        %v428 = vld [vmem:[%s318 + $0x38] sm:$0xff]
        %v429 = vld [vmem:[%s318 + $0x40] sm:$0xff]
        %v430 = vld [vmem:[%s318 + $0x48] sm:$0xff]
        %v431 = vld [vmem:[%s318 + $0x50] sm:$0xff]
        %v432 = vld [vmem:[%s318 + $0x58] sm:$0xff]
        %v433 = vld [vmem:[%s318 + $0x60] sm:$0xff]
        %v434 = vld [vmem:[%s318 + $0x68] sm:$0xff]
        %v435 = vld [vmem:[%s318 + $0x70] sm:$0xff]
        %v436 = vld [vmem:[%s318 + $0x78] sm:$0xff]
        %v437 = vld [vmem:[%s327] sm:$0xff]
        %v438 = vld [vmem:[%s327 + $0x8] sm:$0xff]
        %v439 = vld [vmem:[%s327 + $0x10] sm:$0xff]
        %v440 = vld [vmem:[%s327 + $0x18] sm:$0xff]
        %v441 = vld [vmem:[%s327 + $0x20] sm:$0xff]
        %v442 = vld [vmem:[%s327 + $0x28] sm:$0xff]
        %v443 = vld [vmem:[%s327 + $0x30] sm:$0xff]
        %v444 = vld [vmem:[%s327 + $0x38] sm:$0xff]
        %v445 = vld [vmem:[%s327 + $0x40] sm:$0xff]
        %v446 = vld [vmem:[%s327 + $0x48] sm:$0xff]
        %v447 = vld [vmem:[%s327 + $0x50] sm:$0xff]
        %v448 = vld [vmem:[%s327 + $0x58] sm:$0xff]
        %v449 = vld [vmem:[%s327 + $0x60] sm:$0xff]
        %v450 = vld [vmem:[%s327 + $0x68] sm:$0xff]
        %v451 = vld [vmem:[%s327 + $0x70] sm:$0xff]
        %v452 = vld [vmem:[%s327 + $0x78] sm:$0xff]
        %v453 = vld [vmem:[%s327 + $0x80] sm:$0xff]
        %v454 = vld [vmem:[%s327 + $0x88] sm:$0xff]
        %v455 = vld [vmem:[%s327 + $0x90] sm:$0xff]
        %v456 = vld [vmem:[%s327 + $0x98] sm:$0xff]
        %v457 = vld [vmem:[%s327 + $0xa0] sm:$0xff]
        %v458 = vld [vmem:[%s327 + $0xa8] sm:$0xff]
        %v459 = vld [vmem:[%s327 + $0xb0] sm:$0xff]
        %v460 = vld [vmem:[%s327 + $0xb8] sm:$0xff]
        %v461 = vld [vmem:[%s327 + $0xc0] sm:$0xff]
        %v462 = vld [vmem:[%s327 + $0xc8] sm:$0xff]
        %v463 = vld [vmem:[%s327 + $0xd0] sm:$0xff]
        %v464 = vld [vmem:[%s327 + $0xd8] sm:$0xff]
        %v465 = vld [vmem:[%s327 + $0xe0] sm:$0xff]
        %v466 = vld [vmem:[%s327 + $0xe8] sm:$0xff]
        %v467 = vld [vmem:[%s327 + $0xf0] sm:$0xff]
        %v468 = vld [vmem:[%s327 + $0xf8] sm:$0xff]
        %v469 = vld [vmem:[%s336] sm:$0xff]
        %v470 = vld [vmem:[%s336 + $0x8] sm:$0xff]
        %v471 = vld [vmem:[%s336 + $0x10] sm:$0xff]
        %v472 = vld [vmem:[%s336 + $0x18] sm:$0xff]
        %v473 = vld [vmem:[%s336 + $0x20] sm:$0xff]
        %v474 = vld [vmem:[%s336 + $0x28] sm:$0xff]
        %v475 = vld [vmem:[%s336 + $0x30] sm:$0xff]
        %v476 = vld [vmem:[%s336 + $0x38] sm:$0xff]
        %v477 = vld [vmem:[%s336 + $0x40] sm:$0xff]
        %v478 = vld [vmem:[%s336 + $0x48] sm:$0xff]
        %v479 = vld [vmem:[%s336 + $0x50] sm:$0xff]
        %v480 = vld [vmem:[%s336 + $0x58] sm:$0xff]
        %v481 = vld [vmem:[%s336 + $0x60] sm:$0xff]
        %v482 = vld [vmem:[%s336 + $0x68] sm:$0xff]
        %v483 = vld [vmem:[%s336 + $0x70] sm:$0xff]
        %v484 = vld [vmem:[%s336 + $0x78] sm:$0xff]
        %v485 = vunpack.c.l.bf16 %v469
        %v486 = vunpack.c.h.bf16 %v469
        %v487 = vunpack.c.l.bf16 %v470
        %v488 = vunpack.c.h.bf16 %v470
        %v489 = vunpack.c.l.bf16 %v471
        %v490 = vunpack.c.h.bf16 %v471
        %v491 = vunpack.c.l.bf16 %v472
        %v492 = vunpack.c.h.bf16 %v472
        %v493 = vunpack.c.l.bf16 %v473
        %v494 = vunpack.c.h.bf16 %v473
        %v495 = vunpack.c.l.bf16 %v474
        %v496 = vunpack.c.h.bf16 %v474
        %v497 = vunpack.c.l.bf16 %v475
        %v498 = vunpack.c.h.bf16 %v475
        %v499 = vunpack.c.l.bf16 %v476
        %v500 = vunpack.c.h.bf16 %v476
        %v501 = vunpack.c.l.bf16 %v477
        %v502 = vunpack.c.h.bf16 %v477
        %v503 = vunpack.c.l.bf16 %v478
        %v504 = vunpack.c.h.bf16 %v478
        %v505 = vunpack.c.l.bf16 %v479
        %v506 = vunpack.c.h.bf16 %v479
        %v507 = vunpack.c.l.bf16 %v480
        %v508 = vunpack.c.h.bf16 %v480
        %v509 = vunpack.c.l.bf16 %v481
        %v510 = vunpack.c.h.bf16 %v481
        %v511 = vunpack.c.l.bf16 %v482
        %v512 = vunpack.c.h.bf16 %v482
        %v513 = vunpack.c.l.bf16 %v483
        %v514 = vunpack.c.h.bf16 %v483
        %v515 = vunpack.c.l.bf16 %v484
        %v516 = vunpack.c.h.bf16 %v484
        %v517 = vld [vmem:[%s5] sm:$0x1]
        %v519 = vlaneseq
        %v520 = vshrl.u32 %v519, 7
        %v521 = vsub.s32 0, %v520
        %v522 = vrot.slane %v517, %v521
        %v524 = vmul.f32 %v421, %v522
        %v525 = vmul.f32 %v422, %v522
        %v526 = vmul.f32 %v423, %v522
        %v527 = vmul.f32 %v424, %v522
        %v528 = vmul.f32 %v425, %v522
        %v529 = vmul.f32 %v426, %v522
        %v530 = vmul.f32 %v427, %v522
        %v531 = vmul.f32 %v428, %v522
        %v532 = vmul.f32 %v429, %v522
        %v533 = vmul.f32 %v430, %v522
        %v534 = vmul.f32 %v431, %v522
        %v535 = vmul.f32 %v432, %v522
        %v536 = vmul.f32 %v433, %v522
        %v537 = vmul.f32 %v434, %v522
        %v538 = vmul.f32 %v435, %v522
        %v539 = vmul.f32 %v436, %v522
        %540 = vadd.xlane.f32.xlu0 %v524
        %v541 = vpop.xlane.xlu0 %540
        %542 = vadd.xlane.f32.xlu0 %v525
        %v543 = vpop.xlane.xlu0 %542
        %544 = vadd.xlane.f32.xlu0 %v526
        %v545 = vpop.xlane.xlu0 %544
        %546 = vadd.xlane.f32.xlu0 %v527
        %v547 = vpop.xlane.xlu0 %546
        %548 = vadd.xlane.f32.xlu0 %v528
        %v549 = vpop.xlane.xlu0 %548
        %550 = vadd.xlane.f32.xlu0 %v529
        %v551 = vpop.xlane.xlu0 %550
        %552 = vadd.xlane.f32.xlu0 %v530
        %v553 = vpop.xlane.xlu0 %552
        %554 = vadd.xlane.f32.xlu0 %v531
        %v555 = vpop.xlane.xlu0 %554
        %556 = vadd.xlane.f32.xlu0 %v532
        %v557 = vpop.xlane.xlu0 %556
        %558 = vadd.xlane.f32.xlu0 %v533
        %v559 = vpop.xlane.xlu0 %558
        %560 = vadd.xlane.f32.xlu0 %v534
        %v561 = vpop.xlane.xlu0 %560
        %562 = vadd.xlane.f32.xlu0 %v535
        %v563 = vpop.xlane.xlu0 %562
        %564 = vadd.xlane.f32.xlu0 %v536
        %v565 = vpop.xlane.xlu0 %564
        %566 = vadd.xlane.f32.xlu0 %v537
        %v567 = vpop.xlane.xlu0 %566
        %568 = vadd.xlane.f32.xlu0 %v538
        %v569 = vpop.xlane.xlu0 %568
        %570 = vadd.xlane.f32.xlu0 %v539
        %v571 = vpop.xlane.xlu0 %570
        %v572 = vld [vmem:[%s4] sm:$0x1]
        %573 = vmatprep.subr.mxu0 0.0
        %574 = vmatpush1.xpose.msra.mxu0 %v452
        %575 = vmatprep.subr.mxu0 0.0
        %576 = vmatpush1.xpose.msra.mxu0 %v451
        %577 = vmatprep.subr.mxu0 0.0
        %578 = vmatpush1.xpose.msra.mxu0 %v450
        %579 = vmatprep.subr.mxu0 0.0
        %580 = vmatpush1.xpose.msra.mxu0 %v449
        %581 = vmatprep.subr.mxu0 0.0
        %582 = vmatpush1.xpose.msra.mxu0 %v448
        %583 = vmatprep.subr.mxu0 0.0
        %584 = vmatpush1.xpose.msra.mxu0 %v447
        %585 = vmatprep.subr.mxu0 0.0
        %586 = vmatpush1.xpose.msra.mxu0 %v446
        %587 = vmatprep.subr.mxu0 0.0
        %588 = vmatpush1.xpose.msra.mxu0 %v445
        %589 = vmatprep.subr.mxu0 0.0
        %590 = vmatpush1.xpose.msra.mxu0 %v444
        %591 = vmatprep.subr.mxu0 0.0
        %592 = vmatpush1.xpose.msra.mxu0 %v443
        %593 = vmatprep.subr.mxu0 0.0
        %594 = vmatpush1.xpose.msra.mxu0 %v442
        %595 = vmatprep.subr.mxu0 0.0
        %596 = vmatpush1.xpose.msra.mxu0 %v441
        %597 = vmatprep.subr.mxu0 0.0
        %598 = vmatpush1.xpose.msra.mxu0 %v440
        %599 = vmatprep.subr.mxu0 0.0
        %600 = vmatpush1.xpose.msra.mxu0 %v439
        %601 = vmatprep.subr.mxu0 0.0
        %602 = vmatpush1.xpose.msra.mxu0 %v438
        %603 = vmatprep.subr.mxu0 0.0
        %604 = vmatpush1.xpose.msra.mxu0 %v437
        %605 = vmatprep.subr.mxu0 0.0
        %606 = vmatpush2.xpose.msra.mxu0 %v468
        %607 = vmatprep.subr.mxu0 0.0
        %608 = vmatpush2.xpose.msra.mxu0 %v467
        %609 = vmatprep.subr.mxu0 0.0
        %610 = vmatpush2.xpose.msra.mxu0 %v466
        %611 = vmatprep.subr.mxu0 0.0
        %612 = vmatpush2.xpose.msra.mxu0 %v465
        %613 = vmatprep.subr.mxu0 0.0
        %614 = vmatpush2.xpose.msra.mxu0 %v464
        %615 = vmatprep.subr.mxu0 0.0
        %616 = vmatpush2.xpose.msra.mxu0 %v463
        %617 = vmatprep.subr.mxu0 0.0
        %618 = vmatpush2.xpose.msra.mxu0 %v462
        %619 = vmatprep.subr.mxu0 0.0
        %620 = vmatpush2.xpose.msra.mxu0 %v461
        %621 = vmatprep.subr.mxu0 0.0
        %622 = vmatpush2.xpose.msra.mxu0 %v460
        %623 = vmatprep.subr.mxu0 0.0
        %624 = vmatpush2.xpose.msra.mxu0 %v459
        %625 = vmatprep.subr.mxu0 0.0
        %626 = vmatpush2.xpose.msra.mxu0 %v458
        %627 = vmatprep.subr.mxu0 0.0
        %628 = vmatpush2.xpose.msra.mxu0 %v457
        %629 = vmatprep.subr.mxu0 0.0
        %630 = vmatpush2.xpose.msra.mxu0 %v456
        %631 = vmatprep.subr.mxu0 0.0
        %632 = vmatpush2.xpose.msra.mxu0 %v455
        %633 = vmatprep.subr.mxu0 0.0
        %634 = vmatpush2.xpose.msra.mxu0 %v454
        %635 = vmatprep.subr.mxu0 0.0
        %636 = vmatpush2.xpose.msra.mxu0 %v453
        %637 = vmatprep.mubr.f32.mxu0 0.0
        %638 = vmatmul.mubr.f32.gmra.mxu0 %v572
        %v639 = vpop.f32.mrf.mxu0
        %v640 = vadd.f32 0.0, %v639
        %v641 = vpop.f32.mrf.mxu0
        %v642 = vadd.f32 0.0, %v641
        %643 = vdwg.mxu0
        %v644 = vlaneseq
        %v645 = vshrl.u32 %v644, 7
        %v646 = vsub.s32 0, %v645
        %v647 = vrot.slane %v640, %v646
        %v648 = vlaneseq
        %v649 = vshrl.u32 %v648, 7
        %v650 = vsub.s32 0, %v649
        %v651 = vrot.slane %v642, %v650
        %v652 = vadd.f32 %v647, %v541
        %v653 = vadd.f32 %v651, %v541
        %v654 = vadd.f32 %v647, %v543
        %v655 = vadd.f32 %v651, %v543
        %v656 = vadd.f32 %v647, %v545
        %v657 = vadd.f32 %v651, %v545
        %v658 = vadd.f32 %v647, %v547
        %v659 = vadd.f32 %v651, %v547
        %v660 = vadd.f32 %v647, %v549
        %v661 = vadd.f32 %v651, %v549
        %v662 = vadd.f32 %v647, %v551
        %v663 = vadd.f32 %v651, %v551
        %v664 = vadd.f32 %v647, %v553
        %v665 = vadd.f32 %v651, %v553
        %v666 = vadd.f32 %v647, %v555
        %v667 = vadd.f32 %v651, %v555
        %v668 = vadd.f32 %v647, %v557
        %v669 = vadd.f32 %v651, %v557
        %v670 = vadd.f32 %v647, %v559
        %v671 = vadd.f32 %v651, %v559
        %v672 = vadd.f32 %v647, %v561
        %v673 = vadd.f32 %v651, %v561
        %v674 = vadd.f32 %v647, %v563
        %v675 = vadd.f32 %v651, %v563
        %v676 = vadd.f32 %v647, %v565
        %v677 = vadd.f32 %v651, %v565
        %v678 = vadd.f32 %v647, %v567
        %v679 = vadd.f32 %v651, %v567
        %v680 = vadd.f32 %v647, %v569
        %v681 = vadd.f32 %v651, %v569
        %v682 = vadd.f32 %v647, %v571
        %v683 = vadd.f32 %v651, %v571
        %v684 = vmul.f32 %v485, %v652
        %v685 = vmul.f32 %v486, %v653
        %v686 = vmul.f32 %v487, %v654
        %v687 = vmul.f32 %v488, %v655
        %v688 = vmul.f32 %v489, %v656
        %v689 = vmul.f32 %v490, %v657
        %v690 = vmul.f32 %v491, %v658
        %v691 = vmul.f32 %v492, %v659
        %v692 = vmul.f32 %v493, %v660
        %v693 = vmul.f32 %v494, %v661
        %v694 = vmul.f32 %v495, %v662
        %v695 = vmul.f32 %v496, %v663
        %v696 = vmul.f32 %v497, %v664
        %v697 = vmul.f32 %v498, %v665
        %v698 = vmul.f32 %v499, %v666
        %v699 = vmul.f32 %v500, %v667
        %v700 = vmul.f32 %v501, %v668
        %v701 = vmul.f32 %v502, %v669
        %v702 = vmul.f32 %v503, %v670
        %v703 = vmul.f32 %v504, %v671
        %v704 = vmul.f32 %v505, %v672
        %v705 = vmul.f32 %v506, %v673
        %v706 = vmul.f32 %v507, %v674
        %v707 = vmul.f32 %v508, %v675
        %v708 = vmul.f32 %v509, %v676
        %v709 = vmul.f32 %v510, %v677
        %v710 = vmul.f32 %v511, %v678
        %v711 = vmul.f32 %v512, %v679
        %v712 = vmul.f32 %v513, %v680
        %v713 = vmul.f32 %v514, %v681
        %v714 = vmul.f32 %v515, %v682
        %v715 = vmul.f32 %v516, %v683
        %v716 = vld [vmem:[#allocation3] sm:$0xff]
        %v717 = vld [vmem:[#allocation3 + $0x8] sm:$0xff]
        %v718 = vld [vmem:[#allocation3 + $0x10] sm:$0xff]
        %v719 = vld [vmem:[#allocation3 + $0x18] sm:$0xff]
        %v720 = vld [vmem:[#allocation3 + $0x20] sm:$0xff]
        %v721 = vld [vmem:[#allocation3 + $0x28] sm:$0xff]
        %v722 = vld [vmem:[#allocation3 + $0x30] sm:$0xff]
        %v723 = vld [vmem:[#allocation3 + $0x38] sm:$0xff]
        %v724 = vld [vmem:[#allocation3 + $0x40] sm:$0xff]
        %v725 = vld [vmem:[#allocation3 + $0x48] sm:$0xff]
        %v726 = vld [vmem:[#allocation3 + $0x50] sm:$0xff]
        %v727 = vld [vmem:[#allocation3 + $0x58] sm:$0xff]
        %v728 = vld [vmem:[#allocation3 + $0x60] sm:$0xff]
        %v729 = vld [vmem:[#allocation3 + $0x68] sm:$0xff]
        %v730 = vld [vmem:[#allocation3 + $0x70] sm:$0xff]
        %v731 = vld [vmem:[#allocation3 + $0x78] sm:$0xff]
        %v732 = vadd.f32 %v684, %v685
        %733 = vadd.xlane.f32.xlu0 %v732
        %v734 = vpop.xlane.xlu0 %733
        %v735 = vadd.f32 %v686, %v687
        %736 = vadd.xlane.f32.xlu0 %v735
        %v737 = vpop.xlane.xlu0 %736
        %v738 = vadd.f32 %v688, %v689
        %739 = vadd.xlane.f32.xlu0 %v738
        %v740 = vpop.xlane.xlu0 %739
        %v741 = vadd.f32 %v690, %v691
        %742 = vadd.xlane.f32.xlu0 %v741
        %v743 = vpop.xlane.xlu0 %742
        %v744 = vadd.f32 %v692, %v693
        %745 = vadd.xlane.f32.xlu0 %v744
        %v746 = vpop.xlane.xlu0 %745
        %v747 = vadd.f32 %v694, %v695
        %748 = vadd.xlane.f32.xlu0 %v747
        %v749 = vpop.xlane.xlu0 %748
        %v750 = vadd.f32 %v696, %v697
        %751 = vadd.xlane.f32.xlu0 %v750
        %v752 = vpop.xlane.xlu0 %751
        %v753 = vadd.f32 %v698, %v699
        %754 = vadd.xlane.f32.xlu0 %v753
        %v755 = vpop.xlane.xlu0 %754
        %v756 = vadd.f32 %v700, %v701
        %757 = vadd.xlane.f32.xlu0 %v756
        %v758 = vpop.xlane.xlu0 %757
        %v759 = vadd.f32 %v702, %v703
        %760 = vadd.xlane.f32.xlu0 %v759
        %v761 = vpop.xlane.xlu0 %760
        %v762 = vadd.f32 %v704, %v705
        %763 = vadd.xlane.f32.xlu0 %v762
        %v764 = vpop.xlane.xlu0 %763
        %v765 = vadd.f32 %v706, %v707
        %766 = vadd.xlane.f32.xlu0 %v765
        %v767 = vpop.xlane.xlu0 %766
        %v768 = vadd.f32 %v708, %v709
        %769 = vadd.xlane.f32.xlu0 %v768
        %v770 = vpop.xlane.xlu0 %769
        %v771 = vadd.f32 %v710, %v711
        %772 = vadd.xlane.f32.xlu0 %v771
        %v773 = vpop.xlane.xlu0 %772
        %v774 = vadd.f32 %v712, %v713
        %775 = vadd.xlane.f32.xlu0 %v774
        %v776 = vpop.xlane.xlu0 %775
        %v777 = vadd.f32 %v714, %v715
        %778 = vadd.xlane.f32.xlu0 %v777
        %v779 = vpop.xlane.xlu0 %778
        %v780 = vadd.f32 %v716, %v734
        %v781 = vadd.f32 %v717, %v737
        %v782 = vadd.f32 %v718, %v740
        %v783 = vadd.f32 %v719, %v743
        %v784 = vadd.f32 %v720, %v746
        %v785 = vadd.f32 %v721, %v749
        %v786 = vadd.f32 %v722, %v752
        %v787 = vadd.f32 %v723, %v755
        %v788 = vadd.f32 %v724, %v758
        %v789 = vadd.f32 %v725, %v761
        %v790 = vadd.f32 %v726, %v764
        %v791 = vadd.f32 %v727, %v767
        %v792 = vadd.f32 %v728, %v770
        %v793 = vadd.f32 %v729, %v773
        %v794 = vadd.f32 %v730, %v776
        %v795 = vadd.f32 %v731, %v779
        %vm796 = vcmask 7168
        %797 = vst.msk [vmem:[#allocation3] sm:$0xff] %vm796, %v780
        %798 = vst.msk [vmem:[#allocation3 + $0x8] sm:$0xff] %vm796, %v781
        %799 = vst.msk [vmem:[#allocation3 + $0x10] sm:$0xff] %vm796, %v782
        %800 = vst.msk [vmem:[#allocation3 + $0x18] sm:$0xff] %vm796, %v783
        %801 = vst.msk [vmem:[#allocation3 + $0x20] sm:$0xff] %vm796, %v784
        %802 = vst.msk [vmem:[#allocation3 + $0x28] sm:$0xff] %vm796, %v785
        %803 = vst.msk [vmem:[#allocation3 + $0x30] sm:$0xff] %vm796, %v786
        %804 = vst.msk [vmem:[#allocation3 + $0x38] sm:$0xff] %vm796, %v787
        %805 = vst.msk [vmem:[#allocation3 + $0x40] sm:$0xff] %vm796, %v788
        %806 = vst.msk [vmem:[#allocation3 + $0x48] sm:$0xff] %vm796, %v789
        %807 = vst.msk [vmem:[#allocation3 + $0x50] sm:$0xff] %vm796, %v790
        %808 = vst.msk [vmem:[#allocation3 + $0x58] sm:$0xff] %vm796, %v791
        %809 = vst.msk [vmem:[#allocation3 + $0x60] sm:$0xff] %vm796, %v792
        %810 = vst.msk [vmem:[#allocation3 + $0x68] sm:$0xff] %vm796, %v793
        %811 = vst.msk [vmem:[#allocation3 + $0x70] sm:$0xff] %vm796, %v794
        %812 = vst.msk [vmem:[#allocation3 + $0x78] sm:$0xff] %vm796, %v795
        %v813 = vld [vmem:[#allocation10] sm:$0xff]
        %v814 = vld [vmem:[#allocation10 + $0x8] sm:$0xff]
        %v815 = vld [vmem:[#allocation10 + $0x10] sm:$0xff]
        %v816 = vld [vmem:[#allocation10 + $0x18] sm:$0xff]
        %v817 = vld [vmem:[#allocation10 + $0x20] sm:$0xff]
        %v818 = vld [vmem:[#allocation10 + $0x28] sm:$0xff]
        %v819 = vld [vmem:[#allocation10 + $0x30] sm:$0xff]
        %v820 = vld [vmem:[#allocation10 + $0x38] sm:$0xff]
        %v821 = vld [vmem:[#allocation10 + $0x40] sm:$0xff]
        %v822 = vld [vmem:[#allocation10 + $0x48] sm:$0xff]
        %v823 = vld [vmem:[#allocation10 + $0x50] sm:$0xff]
        %v824 = vld [vmem:[#allocation10 + $0x58] sm:$0xff]
        %v825 = vld [vmem:[#allocation10 + $0x60] sm:$0xff]
        %v826 = vld [vmem:[#allocation10 + $0x68] sm:$0xff]
        %v827 = vld [vmem:[#allocation10 + $0x70] sm:$0xff]
        %v828 = vld [vmem:[#allocation10 + $0x78] sm:$0xff]
        %829 = vmatprep.subr.mxu0 0.0
        %830 = vmatpush1.xpose.msra.mxu0 %v828
        %831 = vmatprep.subr.mxu0 0.0
        %832 = vmatpush1.xpose.msra.mxu0 %v827
        %833 = vmatprep.subr.mxu0 0.0
        %834 = vmatpush1.xpose.msra.mxu0 %v826
        %835 = vmatprep.subr.mxu0 0.0
        %836 = vmatpush1.xpose.msra.mxu0 %v825
        %837 = vmatprep.subr.mxu0 0.0
        %838 = vmatpush1.xpose.msra.mxu0 %v824
        %839 = vmatprep.subr.mxu0 0.0
        %840 = vmatpush1.xpose.msra.mxu0 %v823
        %841 = vmatprep.subr.mxu0 0.0
        %842 = vmatpush1.xpose.msra.mxu0 %v822
        %843 = vmatprep.subr.mxu0 0.0
        %844 = vmatpush1.xpose.msra.mxu0 %v821
        %845 = vmatprep.subr.mxu0 0.0
        %846 = vmatpush1.xpose.msra.mxu0 %v820
        %847 = vmatprep.subr.mxu0 0.0
        %848 = vmatpush1.xpose.msra.mxu0 %v819
        %849 = vmatprep.subr.mxu0 0.0
        %850 = vmatpush1.xpose.msra.mxu0 %v818
        %851 = vmatprep.subr.mxu0 0.0
        %852 = vmatpush1.xpose.msra.mxu0 %v817
        %853 = vmatprep.subr.mxu0 0.0
        %854 = vmatpush1.xpose.msra.mxu0 %v816
        %855 = vmatprep.subr.mxu0 0.0
        %856 = vmatpush1.xpose.msra.mxu0 %v815
        %857 = vmatprep.subr.mxu0 0.0
        %858 = vmatpush1.xpose.msra.mxu0 %v814
        %859 = vmatprep.subr.mxu0 0.0
        %860 = vmatpush1.xpose.msra.mxu0 %v813
        %861 = vmatprep.subr.mxu0 0.0
        %862 = vmatpush2.xpose.msra.mxu0 0.0
        %863 = vmatprep.subr.mxu0 0.0
        %864 = vmatpush2.xpose.msra.mxu0 0.0
        %865 = vmatprep.subr.mxu0 0.0
        %866 = vmatpush2.xpose.msra.mxu0 0.0
        %867 = vmatprep.subr.mxu0 0.0
        %868 = vmatpush2.xpose.msra.mxu0 0.0
        %869 = vmatprep.subr.mxu0 0.0
        %870 = vmatpush2.xpose.msra.mxu0 0.0
        %871 = vmatprep.subr.mxu0 0.0
        %872 = vmatpush2.xpose.msra.mxu0 0.0
        %873 = vmatprep.subr.mxu0 0.0
        %874 = vmatpush2.xpose.msra.mxu0 0.0
        %875 = vmatprep.subr.mxu0 0.0
        %876 = vmatpush2.xpose.msra.mxu0 0.0
        %877 = vmatprep.subr.mxu0 0.0
        %878 = vmatpush2.xpose.msra.mxu0 0.0
        %879 = vmatprep.subr.mxu0 0.0
        %880 = vmatpush2.xpose.msra.mxu0 0.0
        %881 = vmatprep.subr.mxu0 0.0
        %882 = vmatpush2.xpose.msra.mxu0 0.0
        %883 = vmatprep.subr.mxu0 0.0
        %884 = vmatpush2.xpose.msra.mxu0 0.0
        %885 = vmatprep.subr.mxu0 0.0
        %886 = vmatpush2.xpose.msra.mxu0 0.0
        %887 = vmatprep.subr.mxu0 0.0
        %888 = vmatpush2.xpose.msra.mxu0 0.0
        %889 = vmatprep.subr.mxu0 0.0
        %890 = vmatpush2.xpose.msra.mxu0 0.0
        %891 = vmatprep.subr.mxu0 0.0
        %892 = vmatpush2.xpose.msra.mxu0 0.0
        %893 = vmatprep.mubr.f32.mxu0 0.0
        %894 = vmatmul.mubr.f32.gmra.mxu0 %v437
        %v895 = vpop.f32.mrf.mxu0
        %v896 = vadd.f32 0.0, %v895
        %v897 = vpop.f32.mrf.mxu0
        %898 = vmatprep.mubr.f32.mxu0 0.0
        %899 = vmatmul.mubr.f32.gmra.mxu0 %v438
        %v900 = vpop.f32.mrf.mxu0
        %v901 = vadd.f32 0.0, %v900
        %v902 = vpop.f32.mrf.mxu0
        %903 = vmatprep.mubr.f32.mxu0 0.0
        %904 = vmatmul.mubr.f32.gmra.mxu0 %v439
        %v905 = vpop.f32.mrf.mxu0
        %v906 = vadd.f32 0.0, %v905
        %v907 = vpop.f32.mrf.mxu0
        %908 = vmatprep.mubr.f32.mxu0 0.0
        %909 = vmatmul.mubr.f32.gmra.mxu0 %v440
        %v910 = vpop.f32.mrf.mxu0
        %v911 = vadd.f32 0.0, %v910
        %v912 = vpop.f32.mrf.mxu0
        %913 = vmatprep.mubr.f32.mxu0 0.0
        %914 = vmatmul.mubr.f32.gmra.mxu0 %v441
        %v915 = vpop.f32.mrf.mxu0
        %v916 = vadd.f32 0.0, %v915
        %v917 = vpop.f32.mrf.mxu0
        %918 = vmatprep.mubr.f32.mxu0 0.0
        %919 = vmatmul.mubr.f32.gmra.mxu0 %v442
        %v920 = vpop.f32.mrf.mxu0
        %v921 = vadd.f32 0.0, %v920
        %v922 = vpop.f32.mrf.mxu0
        %923 = vmatprep.mubr.f32.mxu0 0.0
        %924 = vmatmul.mubr.f32.gmra.mxu0 %v443
        %v925 = vpop.f32.mrf.mxu0
        %v926 = vadd.f32 0.0, %v925
        %v927 = vpop.f32.mrf.mxu0
        %928 = vmatprep.mubr.f32.mxu0 0.0
        %929 = vmatmul.mubr.f32.gmra.mxu0 %v444
        %v930 = vpop.f32.mrf.mxu0
        %v931 = vadd.f32 0.0, %v930
        %v932 = vpop.f32.mrf.mxu0
        %933 = vmatprep.mubr.f32.mxu0 0.0
        %934 = vmatmul.mubr.f32.gmra.mxu0 %v445
        %v935 = vpop.f32.mrf.mxu0
        %v936 = vadd.f32 0.0, %v935
        %v937 = vpop.f32.mrf.mxu0
        %938 = vmatprep.mubr.f32.mxu0 0.0
        %939 = vmatmul.mubr.f32.gmra.mxu0 %v446
        %v940 = vpop.f32.mrf.mxu0
        %v941 = vadd.f32 0.0, %v940
        %v942 = vpop.f32.mrf.mxu0
        %943 = vmatprep.mubr.f32.mxu0 0.0
        %944 = vmatmul.mubr.f32.gmra.mxu0 %v447
        %v945 = vpop.f32.mrf.mxu0
        %v946 = vadd.f32 0.0, %v945
        %v947 = vpop.f32.mrf.mxu0
        %948 = vmatprep.mubr.f32.mxu0 0.0
        %949 = vmatmul.mubr.f32.gmra.mxu0 %v448
        %v950 = vpop.f32.mrf.mxu0
        %v951 = vadd.f32 0.0, %v950
        %v952 = vpop.f32.mrf.mxu0
        %953 = vmatprep.mubr.f32.mxu0 0.0
        %954 = vmatmul.mubr.f32.gmra.mxu0 %v449
        %v955 = vpop.f32.mrf.mxu0
        %v956 = vadd.f32 0.0, %v955
        %v957 = vpop.f32.mrf.mxu0
        %958 = vmatprep.mubr.f32.mxu0 0.0
        %959 = vmatmul.mubr.f32.gmra.mxu0 %v450
        %v960 = vpop.f32.mrf.mxu0
        %v961 = vadd.f32 0.0, %v960
        %v962 = vpop.f32.mrf.mxu0
        %963 = vmatprep.mubr.f32.mxu0 0.0
        %964 = vmatmul.mubr.f32.gmra.mxu0 %v451
        %v965 = vpop.f32.mrf.mxu0
        %v966 = vadd.f32 0.0, %v965
        %v967 = vpop.f32.mrf.mxu0
        %968 = vmatprep.mubr.f32.mxu0 0.0
        %969 = vmatmul.mubr.f32.gmra.mxu0 %v452
        %v970 = vpop.f32.mrf.mxu0
        %v971 = vadd.f32 0.0, %v970
        %v972 = vpop.f32.mrf.mxu0
        %973 = vmatprep.mubr.f32.mxu0 0.0
        %974 = vmatmul.mubr.f32.gmra.mxu0 %v453
        %v975 = vpop.f32.mrf.mxu0
        %v976 = vadd.f32 0.0, %v975
        %v977 = vpop.f32.mrf.mxu0
        %978 = vmatprep.mubr.f32.mxu0 0.0
        %979 = vmatmul.mubr.f32.gmra.mxu0 %v454
        %v980 = vpop.f32.mrf.mxu0
        %v981 = vadd.f32 0.0, %v980
        %v982 = vpop.f32.mrf.mxu0
        %983 = vmatprep.mubr.f32.mxu0 0.0
        %984 = vmatmul.mubr.f32.gmra.mxu0 %v455
        %v985 = vpop.f32.mrf.mxu0
        %v986 = vadd.f32 0.0, %v985
        %v987 = vpop.f32.mrf.mxu0
        %988 = vmatprep.mubr.f32.mxu0 0.0
        %989 = vmatmul.mubr.f32.gmra.mxu0 %v456
        %v990 = vpop.f32.mrf.mxu0
        %v991 = vadd.f32 0.0, %v990
        %v992 = vpop.f32.mrf.mxu0
        %993 = vmatprep.mubr.f32.mxu0 0.0
        %994 = vmatmul.mubr.f32.gmra.mxu0 %v457
        %v995 = vpop.f32.mrf.mxu0
        %v996 = vadd.f32 0.0, %v995
        %v997 = vpop.f32.mrf.mxu0
        %998 = vmatprep.mubr.f32.mxu0 0.0
        %999 = vmatmul.mubr.f32.gmra.mxu0 %v458
        %v1000 = vpop.f32.mrf.mxu0
        %v1001 = vadd.f32 0.0, %v1000
        %v1002 = vpop.f32.mrf.mxu0
        %1003 = vmatprep.mubr.f32.mxu0 0.0
        %1004 = vmatmul.mubr.f32.gmra.mxu0 %v459
        %v1005 = vpop.f32.mrf.mxu0
        %v1006 = vadd.f32 0.0, %v1005
        %v1007 = vpop.f32.mrf.mxu0
        %1008 = vmatprep.mubr.f32.mxu0 0.0
        %1009 = vmatmul.mubr.f32.gmra.mxu0 %v460
        %v1010 = vpop.f32.mrf.mxu0
        %v1011 = vadd.f32 0.0, %v1010
        %v1012 = vpop.f32.mrf.mxu0
        %1013 = vmatprep.mubr.f32.mxu0 0.0
        %1014 = vmatmul.mubr.f32.gmra.mxu0 %v461
        %v1015 = vpop.f32.mrf.mxu0
        %v1016 = vadd.f32 0.0, %v1015
        %v1017 = vpop.f32.mrf.mxu0
        %1018 = vmatprep.mubr.f32.mxu0 0.0
        %1019 = vmatmul.mubr.f32.gmra.mxu0 %v462
        %v1020 = vpop.f32.mrf.mxu0
        %v1021 = vadd.f32 0.0, %v1020
        %v1022 = vpop.f32.mrf.mxu0
        %1023 = vmatprep.mubr.f32.mxu0 0.0
        %1024 = vmatmul.mubr.f32.gmra.mxu0 %v463
        %v1025 = vpop.f32.mrf.mxu0
        %v1026 = vadd.f32 0.0, %v1025
        %v1027 = vpop.f32.mrf.mxu0
        %1028 = vmatprep.mubr.f32.mxu0 0.0
        %1029 = vmatmul.mubr.f32.gmra.mxu0 %v464
        %v1030 = vpop.f32.mrf.mxu0
        %v1031 = vadd.f32 0.0, %v1030
        %v1032 = vpop.f32.mrf.mxu0
        %1033 = vmatprep.mubr.f32.mxu0 0.0
        %1034 = vmatmul.mubr.f32.gmra.mxu0 %v465
        %v1035 = vpop.f32.mrf.mxu0
        %v1036 = vadd.f32 0.0, %v1035
        %v1037 = vpop.f32.mrf.mxu0
        %1038 = vmatprep.mubr.f32.mxu0 0.0
        %1039 = vmatmul.mubr.f32.gmra.mxu0 %v466
        %v1040 = vpop.f32.mrf.mxu0
        %v1041 = vadd.f32 0.0, %v1040
        %v1042 = vpop.f32.mrf.mxu0
        %1043 = vmatprep.mubr.f32.mxu0 0.0
        %1044 = vmatmul.mubr.f32.gmra.mxu0 %v467
        %v1045 = vpop.f32.mrf.mxu0
        %v1046 = vadd.f32 0.0, %v1045
        %v1047 = vpop.f32.mrf.mxu0
        %1048 = vmatprep.mubr.f32.mxu0 0.0
        %1049 = vmatmul.mubr.f32.gmra.mxu0 %v468
        %v1050 = vpop.f32.mrf.mxu0
        %v1051 = vadd.f32 0.0, %v1050
        %v1052 = vpop.f32.mrf.mxu0
        %1053 = vdwg.mxu0
        %v1054 = vld [vmem:[#allocation2] sm:$0xff]
        %v1055 = vld [vmem:[#allocation2 + $0x8] sm:$0xff]
        %v1056 = vld [vmem:[#allocation2 + $0x10] sm:$0xff]
        %v1057 = vld [vmem:[#allocation2 + $0x18] sm:$0xff]
        %v1058 = vld [vmem:[#allocation2 + $0x20] sm:$0xff]
        %v1059 = vld [vmem:[#allocation2 + $0x28] sm:$0xff]
        %v1060 = vld [vmem:[#allocation2 + $0x30] sm:$0xff]
        %v1061 = vld [vmem:[#allocation2 + $0x38] sm:$0xff]
        %v1062 = vld [vmem:[#allocation2 + $0x40] sm:$0xff]
        %v1063 = vld [vmem:[#allocation2 + $0x48] sm:$0xff]
        %v1064 = vld [vmem:[#allocation2 + $0x50] sm:$0xff]
        %v1065 = vld [vmem:[#allocation2 + $0x58] sm:$0xff]
        %v1066 = vld [vmem:[#allocation2 + $0x60] sm:$0xff]
        %v1067 = vld [vmem:[#allocation2 + $0x68] sm:$0xff]
        %v1068 = vld [vmem:[#allocation2 + $0x70] sm:$0xff]
        %v1069 = vld [vmem:[#allocation2 + $0x78] sm:$0xff]
        %1070 = vmatprep.subr.mxu0 0.0
        %1071 = vmatpush1.msra.mxu0 %v971
        %1072 = vmatprep.subr.mxu0 0.0
        %1073 = vmatpush1.msra.mxu0 %v966
        %1074 = vmatprep.subr.mxu0 0.0
        %1075 = vmatpush1.msra.mxu0 %v961
        %1076 = vmatprep.subr.mxu0 0.0
        %1077 = vmatpush1.msra.mxu0 %v956
        %1078 = vmatprep.subr.mxu0 0.0
        %1079 = vmatpush1.msra.mxu0 %v951
        %1080 = vmatprep.subr.mxu0 0.0
        %1081 = vmatpush1.msra.mxu0 %v946
        %1082 = vmatprep.subr.mxu0 0.0
        %1083 = vmatpush1.msra.mxu0 %v941
        %1084 = vmatprep.subr.mxu0 0.0
        %1085 = vmatpush1.msra.mxu0 %v936
        %1086 = vmatprep.subr.mxu0 0.0
        %1087 = vmatpush1.msra.mxu0 %v931
        %1088 = vmatprep.subr.mxu0 0.0
        %1089 = vmatpush1.msra.mxu0 %v926
        %1090 = vmatprep.subr.mxu0 0.0
        %1091 = vmatpush1.msra.mxu0 %v921
        %1092 = vmatprep.subr.mxu0 0.0
        %1093 = vmatpush1.msra.mxu0 %v916
        %1094 = vmatprep.subr.mxu0 0.0
        %1095 = vmatpush1.msra.mxu0 %v911
        %1096 = vmatprep.subr.mxu0 0.0
        %1097 = vmatpush1.msra.mxu0 %v906
        %1098 = vmatprep.subr.mxu0 0.0
        %1099 = vmatpush1.msra.mxu0 %v901
        %1100 = vmatprep.subr.mxu0 0.0
        %1101 = vmatpush1.msra.mxu0 %v896
        %1102 = vmatprep.subr.mxu0 0.0
        %1103 = vmatpush2.msra.mxu0 %v1051
        %1104 = vmatprep.subr.mxu0 0.0
        %1105 = vmatpush2.msra.mxu0 %v1046
        %1106 = vmatprep.subr.mxu0 0.0
        %1107 = vmatpush2.msra.mxu0 %v1041
        %1108 = vmatprep.subr.mxu0 0.0
        %1109 = vmatpush2.msra.mxu0 %v1036
        %1110 = vmatprep.subr.mxu0 0.0
        %1111 = vmatpush2.msra.mxu0 %v1031
        %1112 = vmatprep.subr.mxu0 0.0
        %1113 = vmatpush2.msra.mxu0 %v1026
        %1114 = vmatprep.subr.mxu0 0.0
        %1115 = vmatpush2.msra.mxu0 %v1021
        %1116 = vmatprep.subr.mxu0 0.0
        %1117 = vmatpush2.msra.mxu0 %v1016
        %1118 = vmatprep.subr.mxu0 0.0
        %1119 = vmatpush2.msra.mxu0 %v1011
        %1120 = vmatprep.subr.mxu0 0.0
        %1121 = vmatpush2.msra.mxu0 %v1006
        %1122 = vmatprep.subr.mxu0 0.0
        %1123 = vmatpush2.msra.mxu0 %v1001
        %1124 = vmatprep.subr.mxu0 0.0
        %1125 = vmatpush2.msra.mxu0 %v996
        %1126 = vmatprep.subr.mxu0 0.0
        %1127 = vmatpush2.msra.mxu0 %v991
        %1128 = vmatprep.subr.mxu0 0.0
        %1129 = vmatpush2.msra.mxu0 %v986
        %1130 = vmatprep.subr.mxu0 0.0
        %1131 = vmatpush2.msra.mxu0 %v981
        %1132 = vmatprep.subr.mxu0 0.0
        %1133 = vmatpush2.msra.mxu0 %v976
        %1134 = vmatprep.mubr.f32.mxu0 %v685
        %1135 = vmatmul.mubr.f32.gmra.mxu0 %v684
        %v1136 = vpop.f32.mrf.mxu0
        %v1137 = vadd.f32 0.0, %v1136
        %v1138 = vpop.f32.mrf.mxu0
        %1139 = vmatprep.mubr.f32.mxu0 %v687
        %1140 = vmatmul.mubr.f32.gmra.mxu0 %v686
        %v1141 = vpop.f32.mrf.mxu0
        %v1142 = vadd.f32 0.0, %v1141
        %v1143 = vpop.f32.mrf.mxu0
        %1144 = vmatprep.mubr.f32.mxu0 %v689
        %1145 = vmatmul.mubr.f32.gmra.mxu0 %v688
        %v1146 = vpop.f32.mrf.mxu0
        %v1147 = vadd.f32 0.0, %v1146
        %v1148 = vpop.f32.mrf.mxu0
        %1149 = vmatprep.mubr.f32.mxu0 %v691
        %1150 = vmatmul.mubr.f32.gmra.mxu0 %v690
        %v1151 = vpop.f32.mrf.mxu0
        %v1152 = vadd.f32 0.0, %v1151
        %v1153 = vpop.f32.mrf.mxu0
        %1154 = vmatprep.mubr.f32.mxu0 %v693
        %1155 = vmatmul.mubr.f32.gmra.mxu0 %v692
        %v1156 = vpop.f32.mrf.mxu0
        %v1157 = vadd.f32 0.0, %v1156
        %v1158 = vpop.f32.mrf.mxu0
        %1159 = vmatprep.mubr.f32.mxu0 %v695
        %1160 = vmatmul.mubr.f32.gmra.mxu0 %v694
        %v1161 = vpop.f32.mrf.mxu0
        %v1162 = vadd.f32 0.0, %v1161
        %v1163 = vpop.f32.mrf.mxu0
        %1164 = vmatprep.mubr.f32.mxu0 %v697
        %1165 = vmatmul.mubr.f32.gmra.mxu0 %v696
        %v1166 = vpop.f32.mrf.mxu0
        %v1167 = vadd.f32 0.0, %v1166
        %v1168 = vpop.f32.mrf.mxu0
        %1169 = vmatprep.mubr.f32.mxu0 %v699
        %1170 = vmatmul.mubr.f32.gmra.mxu0 %v698
        %v1171 = vpop.f32.mrf.mxu0
        %v1172 = vadd.f32 0.0, %v1171
        %v1173 = vpop.f32.mrf.mxu0
        %1174 = vmatprep.mubr.f32.mxu0 %v701
        %1175 = vmatmul.mubr.f32.gmra.mxu0 %v700
        %v1176 = vpop.f32.mrf.mxu0
        %v1177 = vadd.f32 0.0, %v1176
        %v1178 = vpop.f32.mrf.mxu0
        %1179 = vmatprep.mubr.f32.mxu0 %v703
        %1180 = vmatmul.mubr.f32.gmra.mxu0 %v702
        %v1181 = vpop.f32.mrf.mxu0
        %v1182 = vadd.f32 0.0, %v1181
        %v1183 = vpop.f32.mrf.mxu0
        %1184 = vmatprep.mubr.f32.mxu0 %v705
        %1185 = vmatmul.mubr.f32.gmra.mxu0 %v704
        %v1186 = vpop.f32.mrf.mxu0
        %v1187 = vadd.f32 0.0, %v1186
        %v1188 = vpop.f32.mrf.mxu0
        %1189 = vmatprep.mubr.f32.mxu0 %v707
        %1190 = vmatmul.mubr.f32.gmra.mxu0 %v706
        %v1191 = vpop.f32.mrf.mxu0
        %v1192 = vadd.f32 0.0, %v1191
        %v1193 = vpop.f32.mrf.mxu0
        %1194 = vmatprep.mubr.f32.mxu0 %v709
        %1195 = vmatmul.mubr.f32.gmra.mxu0 %v708
        %v1196 = vpop.f32.mrf.mxu0
        %v1197 = vadd.f32 0.0, %v1196
        %v1198 = vpop.f32.mrf.mxu0
        %1199 = vmatprep.mubr.f32.mxu0 %v711
        %1200 = vmatmul.mubr.f32.gmra.mxu0 %v710
        %v1201 = vpop.f32.mrf.mxu0
        %v1202 = vadd.f32 0.0, %v1201
        %v1203 = vpop.f32.mrf.mxu0
        %1204 = vmatprep.mubr.f32.mxu0 %v713
        %1205 = vmatmul.mubr.f32.gmra.mxu0 %v712
        %v1206 = vpop.f32.mrf.mxu0
        %v1207 = vadd.f32 0.0, %v1206
        %v1208 = vpop.f32.mrf.mxu0
        %1209 = vmatprep.mubr.f32.mxu0 %v715
        %1210 = vmatmul.mubr.f32.gmra.mxu0 %v714
        %v1211 = vpop.f32.mrf.mxu0
        %v1212 = vadd.f32 0.0, %v1211
        %v1213 = vpop.f32.mrf.mxu0
        %1214 = vdwg.mxu0
        %v1215 = vadd.f32 %v1054, %v1137
        %v1216 = vadd.f32 %v1055, %v1142
        %v1217 = vadd.f32 %v1056, %v1147
        %v1218 = vadd.f32 %v1057, %v1152
        %v1219 = vadd.f32 %v1058, %v1157
        %v1220 = vadd.f32 %v1059, %v1162
        %v1221 = vadd.f32 %v1060, %v1167
        %v1222 = vadd.f32 %v1061, %v1172
        %v1223 = vadd.f32 %v1062, %v1177
        %v1224 = vadd.f32 %v1063, %v1182
        %v1225 = vadd.f32 %v1064, %v1187
        %v1226 = vadd.f32 %v1065, %v1192
        %v1227 = vadd.f32 %v1066, %v1197
        %v1228 = vadd.f32 %v1067, %v1202
        %v1229 = vadd.f32 %v1068, %v1207
        %v1230 = vadd.f32 %v1069, %v1212
        %1231 = vst [vmem:[#allocation2] sm:$0xff] %v1215
        %1232 = vst [vmem:[#allocation2 + $0x8] sm:$0xff] %v1216
        %1233 = vst [vmem:[#allocation2 + $0x10] sm:$0xff] %v1217
        %1234 = vst [vmem:[#allocation2 + $0x18] sm:$0xff] %v1218
        %1235 = vst [vmem:[#allocation2 + $0x20] sm:$0xff] %v1219
        %1236 = vst [vmem:[#allocation2 + $0x28] sm:$0xff] %v1220
        %1237 = vst [vmem:[#allocation2 + $0x30] sm:$0xff] %v1221
        %1238 = vst [vmem:[#allocation2 + $0x38] sm:$0xff] %v1222
        %1239 = vst [vmem:[#allocation2 + $0x40] sm:$0xff] %v1223
        %1240 = vst [vmem:[#allocation2 + $0x48] sm:$0xff] %v1224
        %1241 = vst [vmem:[#allocation2 + $0x50] sm:$0xff] %v1225
        %1242 = vst [vmem:[#allocation2 + $0x58] sm:$0xff] %v1226
        %1243 = vst [vmem:[#allocation2 + $0x60] sm:$0xff] %v1227
        %1244 = vst [vmem:[#allocation2 + $0x68] sm:$0xff] %v1228
        %1245 = vst [vmem:[#allocation2 + $0x70] sm:$0xff] %v1229
        %1246 = vst [vmem:[#allocation2 + $0x78] sm:$0xff] %v1230
        %p1247 = scmp.eq.s32.totalorder %s32, 1
        // Predicated region
        $region65: #{tpu_custom_call.1} parent=43 // pred_check
          %p1248 = pneg %p1247
        $region66: #{tpu_custom_call.1} parent=43 // pred_check_branch
          %1250 = sbr.rel (%p1248) target = $region68
        $region67: #{tpu_custom_call.1} parent=43 // pred_region
          %v1251 = vld [vmem:[#allocation3] sm:$0xff]
          %v1252 = vld [vmem:[#allocation3 + $0x8] sm:$0xff]
          %v1253 = vld [vmem:[#allocation3 + $0x10] sm:$0xff]
          %v1254 = vld [vmem:[#allocation3 + $0x18] sm:$0xff]
          %v1255 = vld [vmem:[#allocation3 + $0x20] sm:$0xff]
          %v1256 = vld [vmem:[#allocation3 + $0x28] sm:$0xff]
          %v1257 = vld [vmem:[#allocation3 + $0x30] sm:$0xff]
          %v1258 = vld [vmem:[#allocation3 + $0x38] sm:$0xff]
          %v1259 = vld [vmem:[#allocation3 + $0x40] sm:$0xff]
          %v1260 = vld [vmem:[#allocation3 + $0x48] sm:$0xff]
          %v1261 = vld [vmem:[#allocation3 + $0x50] sm:$0xff]
          %v1262 = vld [vmem:[#allocation3 + $0x58] sm:$0xff]
          %v1263 = vld [vmem:[#allocation3 + $0x60] sm:$0xff]
          %v1264 = vld [vmem:[#allocation3 + $0x68] sm:$0xff]
          %v1265 = vld [vmem:[#allocation3 + $0x70] sm:$0xff]
          %v1266 = vld [vmem:[#allocation3 + $0x78] sm:$0xff]
          %v1267 = vand.u32 2147483647, %v1251
          %v1268 = vand.u32 2147483647, %v1252
          %v1269 = vand.u32 2147483647, %v1253
          %v1270 = vand.u32 2147483647, %v1254
          %v1271 = vand.u32 2147483647, %v1255
          %v1272 = vand.u32 2147483647, %v1256
          %v1273 = vand.u32 2147483647, %v1257
          %v1274 = vand.u32 2147483647, %v1258
          %v1275 = vand.u32 2147483647, %v1259
          %v1276 = vand.u32 2147483647, %v1260
          %v1277 = vand.u32 2147483647, %v1261
          %v1278 = vand.u32 2147483647, %v1262
          %v1279 = vand.u32 2147483647, %v1263
          %v1280 = vand.u32 2147483647, %v1264
          %v1281 = vand.u32 2147483647, %v1265
          %v1282 = vand.u32 2147483647, %v1266
          %vm1283 = vcmp.lt.f32.partialorder %v1267, 1e-12
          %vm1284 = vcmp.lt.f32.partialorder %v1268, 1e-12
          %vm1285 = vcmp.lt.f32.partialorder %v1269, 1e-12
          %vm1286 = vcmp.lt.f32.partialorder %v1270, 1e-12
          %vm1287 = vcmp.lt.f32.partialorder %v1271, 1e-12
          %vm1288 = vcmp.lt.f32.partialorder %v1272, 1e-12
          %vm1289 = vcmp.lt.f32.partialorder %v1273, 1e-12
          %vm1290 = vcmp.lt.f32.partialorder %v1274, 1e-12
          %vm1291 = vcmp.lt.f32.partialorder %v1275, 1e-12
          %vm1292 = vcmp.lt.f32.partialorder %v1276, 1e-12
          %vm1293 = vcmp.lt.f32.partialorder %v1277, 1e-12
          %vm1294 = vcmp.lt.f32.partialorder %v1278, 1e-12
          %vm1295 = vcmp.lt.f32.partialorder %v1279, 1e-12
          %vm1296 = vcmp.lt.f32.partialorder %v1280, 1e-12
          %vm1297 = vcmp.lt.f32.partialorder %v1281, 1e-12
          %vm1298 = vcmp.lt.f32.partialorder %v1282, 1e-12
          %v1299 = vsel %vm1283, 1.0, %v1251
          %v1300 = vsel %vm1284, 1.0, %v1252
          %v1301 = vsel %vm1285, 1.0, %v1253
          %v1302 = vsel %vm1286, 1.0, %v1254
          %v1303 = vsel %vm1287, 1.0, %v1255
          %v1304 = vsel %vm1288, 1.0, %v1256
          %v1305 = vsel %vm1289, 1.0, %v1257
          %v1306 = vsel %vm1290, 1.0, %v1258
          %v1307 = vsel %vm1291, 1.0, %v1259
          %v1308 = vsel %vm1292, 1.0, %v1260
          %v1309 = vsel %vm1293, 1.0, %v1261
          %v1310 = vsel %vm1294, 1.0, %v1262
          %v1311 = vsel %vm1295, 1.0, %v1263
          %v1312 = vsel %vm1296, 1.0, %v1264
          %v1313 = vsel %vm1297, 1.0, %v1265
          %v1314 = vsel %vm1298, 1.0, %v1266
          %v1315 = vld [vmem:[#allocation2] sm:$0xff]
          %v1316 = vld [vmem:[#allocation2 + $0x8] sm:$0xff]
          %v1317 = vld [vmem:[#allocation2 + $0x10] sm:$0xff]
          %v1318 = vld [vmem:[#allocation2 + $0x18] sm:$0xff]
          %v1319 = vld [vmem:[#allocation2 + $0x20] sm:$0xff]
          %v1320 = vld [vmem:[#allocation2 + $0x28] sm:$0xff]
          %v1321 = vld [vmem:[#allocation2 + $0x30] sm:$0xff]
          %v1322 = vld [vmem:[#allocation2 + $0x38] sm:$0xff]
          %v1323 = vld [vmem:[#allocation2 + $0x40] sm:$0xff]
          %v1324 = vld [vmem:[#allocation2 + $0x48] sm:$0xff]
          %v1325 = vld [vmem:[#allocation2 + $0x50] sm:$0xff]
          %v1326 = vld [vmem:[#allocation2 + $0x58] sm:$0xff]
          %v1327 = vld [vmem:[#allocation2 + $0x60] sm:$0xff]
          %v1328 = vld [vmem:[#allocation2 + $0x68] sm:$0xff]
          %v1329 = vld [vmem:[#allocation2 + $0x70] sm:$0xff]
          %v1330 = vld [vmem:[#allocation2 + $0x78] sm:$0xff]
          %v1331 = vrcp.pop %v1299
          %v1332 = vrcp.pop %v1300
          %v1333 = vrcp.pop %v1301
          %v1334 = vrcp.pop %v1302
          %v1335 = vrcp.pop %v1303
          %v1336 = vrcp.pop %v1304
          %v1337 = vrcp.pop %v1305
          %v1338 = vrcp.pop %v1306
          %v1339 = vrcp.pop %v1307
          %v1340 = vrcp.pop %v1308
          %v1341 = vrcp.pop %v1309
          %v1342 = vrcp.pop %v1310
          %v1343 = vrcp.pop %v1311
          %v1344 = vrcp.pop %v1312
          %v1345 = vrcp.pop %v1313
          %v1346 = vrcp.pop %v1314
          %1348 = vset.pattern.permute.xlu0 0
          %1349 = vperm.xlu0 %1348, %v1331
          %v1350 = vpop.permute.xlu0 %1349
          %1353 = vset.pattern.permute.xlu0 0
          %1354 = vperm.xlu0 %1353, %v1332
          %v1355 = vpop.permute.xlu0 %1354
          %1358 = vset.pattern.permute.xlu0 0
          %1359 = vperm.xlu0 %1358, %v1333
          %v1360 = vpop.permute.xlu0 %1359
          %1363 = vset.pattern.permute.xlu0 0
          %1364 = vperm.xlu0 %1363, %v1334
          %v1365 = vpop.permute.xlu0 %1364
          %1368 = vset.pattern.permute.xlu0 0
          %1369 = vperm.xlu0 %1368, %v1335
          %v1370 = vpop.permute.xlu0 %1369
          %1373 = vset.pattern.permute.xlu0 0
          %1374 = vperm.xlu0 %1373, %v1336
          %v1375 = vpop.permute.xlu0 %1374
          %1378 = vset.pattern.permute.xlu0 0
          %1379 = vperm.xlu0 %1378, %v1337
          %v1380 = vpop.permute.xlu0 %1379
          %1383 = vset.pattern.permute.xlu0 0
          %1384 = vperm.xlu0 %1383, %v1338
          %v1385 = vpop.permute.xlu0 %1384
          %1388 = vset.pattern.permute.xlu0 0
          %1389 = vperm.xlu0 %1388, %v1339
          %v1390 = vpop.permute.xlu0 %1389
          %1393 = vset.pattern.permute.xlu0 0
          %1394 = vperm.xlu0 %1393, %v1340
          %v1395 = vpop.permute.xlu0 %1394
          %1398 = vset.pattern.permute.xlu0 0
          %1399 = vperm.xlu0 %1398, %v1341
          %v1400 = vpop.permute.xlu0 %1399
          %1403 = vset.pattern.permute.xlu0 0
          %1404 = vperm.xlu0 %1403, %v1342
          %v1405 = vpop.permute.xlu0 %1404
          %1408 = vset.pattern.permute.xlu0 0
          %1409 = vperm.xlu0 %1408, %v1343
          %v1410 = vpop.permute.xlu0 %1409
          %1413 = vset.pattern.permute.xlu0 0
          %1414 = vperm.xlu0 %1413, %v1344
          %v1415 = vpop.permute.xlu0 %1414
          %1418 = vset.pattern.permute.xlu0 0
          %1419 = vperm.xlu0 %1418, %v1345
          %v1420 = vpop.permute.xlu0 %1419
          %1423 = vset.pattern.permute.xlu0 0
          %1424 = vperm.xlu0 %1423, %v1346
          %v1425 = vpop.permute.xlu0 %1424
          %v1427 = vmul.f32 %v1315, %v1350
          %v1428 = vmul.f32 %v1316, %v1355
          %v1429 = vmul.f32 %v1317, %v1360
          %v1430 = vmul.f32 %v1318, %v1365
          %v1431 = vmul.f32 %v1319, %v1370
          %v1432 = vmul.f32 %v1320, %v1375
          %v1433 = vmul.f32 %v1321, %v1380
          %v1434 = vmul.f32 %v1322, %v1385
          %v1435 = vmul.f32 %v1323, %v1390
          %v1436 = vmul.f32 %v1324, %v1395
          %v1437 = vmul.f32 %v1325, %v1400
          %v1438 = vmul.f32 %v1326, %v1405
          %v1439 = vmul.f32 %v1327, %v1410
          %v1440 = vmul.f32 %v1328, %v1415
          %v1441 = vmul.f32 %v1329, %v1420
          %v1442 = vmul.f32 %v1330, %v1425
          %1443 = vst [vmem:[%s378] sm:$0xff] %v1427
          %1444 = vst [vmem:[%s378 + $0x8] sm:$0xff] %v1428
          %1445 = vst [vmem:[%s378 + $0x10] sm:$0xff] %v1429
          %1446 = vst [vmem:[%s378 + $0x18] sm:$0xff] %v1430
          %1447 = vst [vmem:[%s378 + $0x20] sm:$0xff] %v1431
          %1448 = vst [vmem:[%s378 + $0x28] sm:$0xff] %v1432
          %1449 = vst [vmem:[%s378 + $0x30] sm:$0xff] %v1433
          %1450 = vst [vmem:[%s378 + $0x38] sm:$0xff] %v1434
          %1451 = vst [vmem:[%s378 + $0x40] sm:$0xff] %v1435
          %1452 = vst [vmem:[%s378 + $0x48] sm:$0xff] %v1436
          %1453 = vst [vmem:[%s378 + $0x50] sm:$0xff] %v1437
          %1454 = vst [vmem:[%s378 + $0x58] sm:$0xff] %v1438
          %1455 = vst [vmem:[%s378 + $0x60] sm:$0xff] %v1439
          %1456 = vst [vmem:[%s378 + $0x68] sm:$0xff] %v1440
          %1457 = vst [vmem:[%s378 + $0x70] sm:$0xff] %v1441
          %1458 = vst [vmem:[%s378 + $0x78] sm:$0xff] %v1442
        $region68: #{tpu_custom_call.1} parent=43 // pred_fallthru
          _
        %s1459 = sand.u32 %s190, 1
        %s1460 = scalar_lea.sflag [#allocation6], %s1459
        %s1461 = sand.u32 %s190, 1
        %s1462 = smul.addr %s1461, 128
        %s1463 = scalar_lea.vmem [#allocation12], %s1462
        // Predicated region
        $region69: #{tpu_custom_call.1} parent=43 // pred_check
          %p1464 = pneg %p200
        $region70: #{tpu_custom_call.1} parent=43 // pred_check_branch
          %1466 = sbr.rel (%p1464) target = $region72
        $region71: #{tpu_custom_call.1} parent=43 // pred_region
          %s1467 = smul.u32 16, %s31
          %s1469 = ssub.s32 2048, 2048
          %1470 = vsyncadd %s1460, %s1469
          %s1471 = smul.addr %s1467, 128
          %s1472 = scalar_lea.hbm %s6, %s1471
          %s1473 = sshll.u32 %s1463, 4
          %s1474 = int_to_ptr.vmem [resolvable:$true] %s1473
          %1479 = dma.vmem_to_hbm [thread:$0]  %s1474, 2048, %s1472, %s1460, 128, 128, 8
        $region72: #{tpu_custom_call.1} parent=43 // pred_fallthru
          _
      $region44: #{tpu_custom_call.1} parent=5 // pred_fallthru
        _
      %p1480 = scmp.le.s32.totalorder 2, %s22
      // Predicated region
      $region73: #{tpu_custom_call.1} parent=5 // pred_check
        %p1481 = pneg %p1480
      $region74: #{tpu_custom_call.1} parent=5 // pred_check_branch
        %1483 = sbr.rel (%p1481) target = $region76
      $region75: #{tpu_custom_call.1} parent=5 // pred_region
        %s1484 = ssub.s32 %s22, 2
        // Predicated region
        $region77: #{tpu_custom_call.1} parent=75 // pred_check
          %p1485 = pneg %p206
        $region78: #{tpu_custom_call.1} parent=75 // pred_check_branch
          %1487 = sbr.rel (%p1485) target = $region80
        $region79: #{tpu_custom_call.1} parent=75 // pred_region
          %s1488 = sand.u32 %s191, 1
          %s1489 = scalar_lea.sflag [#allocation6], %s1488
          %s1490 = sand.u32 %s191, 1
          %s1491 = smul.addr %s1490, 128
          %s1492 = scalar_lea.vmem [#allocation12], %s1491
          %1493 = dma.done %s1489, 2048
        $region80: #{tpu_custom_call.1} parent=75 // pred_fallthru
          _
      $region76: #{tpu_custom_call.1} parent=5 // pred_fallthru
        _
    $region6: #{tpu_custom_call.1} parent=1 // loop_footer
      %s26 = sadd.s32 1, %s22
    $region7: #{tpu_custom_call.1} parent=1 // loop_footer_branch
      %21 = sbr.rel target = $region3
    $region8: #{tpu_custom_call.1} parent=1 // loop_exit
      _
    %1494 = vsyncpa [#allocation5], 1
    %s1495 = scalar_lea.sflag [#allocation5], 1
    %1496 = vsyncpa %s1495, 1
    %1497 = vsyncpa [#allocation8], 1
    %s1498 = scalar_lea.sflag [#allocation8], 1
    %1499 = vsyncpa %s1498, 1
    %1500 = vsyncpa [#allocation11], 1
    %1501 = vsyncpa [#allocation6], 1
    %s1502 = scalar_lea.sflag [#allocation6], 1
    %1503 = vsyncpa %s1502, 1

</llo_original>
